<compile_context>
chip_gen: v5e
topology: v5e:2x2
jax: 0.10.0
libtpu: 0.0.40
codegen_flags: <defaults>
</compile_context>

<pallas_src>
import functools

import jax
import jax.numpy as jnp
from jax.experimental import pallas as pl
from jax.experimental.pallas import tpu as pltpu


def _round_up(n, m):
    return ((n + m - 1) // m) * m


def _vmem_limit(byte_terms):
    est = sum(byte_terms)
    # 25% headroom + 2 MiB slack, clamped to [32 MiB, 64 MiB] so it is valid
    # on every generation (v5e/v6e have 128 MiB physical, v7x has 64 MiB).
    return int(min(max(5 * est // 4 + (2 << 20), 32 << 20), 64 << 20))


# ----------------------------- kernel bodies -----------------------------
def _span_prep_kernel(y_ref, sw_ref, sb_ref, w_ref, u_ref, *, n_out, apply_act):
    """Per (batch, Ls-tile): span MLP + fold W into the span side.

    y_ref : (1, tile_ls, span_dim)        f32
    sw_ref: (span_dim, d_pad)             bf16
    sb_ref: (1, d_pad)                    f32   (bias column D set to 1)
    w_ref : (n_out, d_pad, d_pad)         bf16
    u_ref : (1, n_out, d_pad, tile_ls)    bf16   U[o] = W[o] @ span'^T
    """
    h = jnp.dot(y_ref[0].astype(jnp.bfloat16), sw_ref[...],
                preferred_element_type=jnp.float32)
    h = h + sb_ref[...]
    if apply_act:
        h = jnp.where(h > 0, h, 0.1 * h)          # LeakyReLU(0.1); bias col -> 1
    # One transpose per (batch, Ls-tile); amortized over all Lp tiles and heads.
    span_t = jnp.transpose(h).astype(jnp.bfloat16)         # (d_pad, tile_ls)
    for o in range(n_out):                                   # n_out is small/static
        u = jnp.dot(w_ref[o], span_t, preferred_element_type=jnp.float32)
        u_ref[0, o] = u.astype(u_ref.dtype)                  # lane-dense bf16 store


def _score_kernel(x_ref, pw_ref, pb_ref, u_ref, o_ref, *, n_out, apply_act):
    """Per (batch, Lp-tile, Ls-tile): predicate MLP + biaffine contraction.

    x_ref : (1, tile_lp, hidden_dim)      f32
    pw_ref: (hidden_dim, d_pad)           bf16
    pb_ref: (1, d_pad)                    f32
    u_ref : (1, n_out, d_pad, tile_ls)    bf16
    o_ref : (1, n_out, tile_lp, tile_ls)  f32
    """
    h = jnp.dot(x_ref[0].astype(jnp.bfloat16), pw_ref[...],
                preferred_element_type=jnp.float32)
    h = h + pb_ref[...]
    if apply_act:
        h = jnp.where(h > 0, h, 0.1 * h)
    p_ext = h.astype(jnp.bfloat16)                           # (tile_lp, d_pad)
    for o in range(n_out):
        s = jnp.dot(p_ext, u_ref[0, o], preferred_element_type=jnp.float32)
        o_ref[0, o] = s.astype(o_ref.dtype)                  # lane-dense f32 store


# ----------------------------- parameter preparation -----------------------------
def prepare_params(params, *, hidden_dim, span_dim, span_affine_dim, n_out):
    """Pad / fold / cast weights once (hoisted out of the per-call forward)."""
    use_mlp = span_affine_dim > 0
    D = span_affine_dim if use_mlp else hidden_dim
    D1 = D + 1
    d_pad = _round_up(D1, 128)

    if use_mlp:
        pw = jnp.zeros((hidden_dim, d_pad), jnp.float32).at[:, :D].set(params["p_w"])
        pb = (jnp.zeros((1, d_pad), jnp.float32)
              .at[0, :D].set(params["p_b"]).at[0, D].set(1.0))
        sw = jnp.zeros((span_dim, d_pad), jnp.float32).at[:, :D].set(params["s_w"])
        sb = (jnp.zeros((1, d_pad), jnp.float32)
              .at[0, :D].set(params["s_b"]).at[0, D].set(1.0))
    else:
        # Identity projection (exact in bf16) + bias column; no activation.
        pw = jnp.zeros((hidden_dim, d_pad), jnp.float32).at[:, :D].set(
            jnp.eye(hidden_dim, dtype=jnp.float32))
        pb = jnp.zeros((1, d_pad), jnp.float32).at[0, D].set(1.0)
        sw = jnp.zeros((span_dim, d_pad), jnp.float32).at[:, :span_dim].set(
            jnp.eye(span_dim, dtype=jnp.float32))
        sb = jnp.zeros((1, d_pad), jnp.float32).at[0, D].set(1.0)

    W = params["W"].astype(jnp.float32)
    W_pad = jnp.zeros((n_out, d_pad, d_pad), jnp.float32).at[:, :D1, :D1].set(W)

    return {
        "pw": pw.astype(jnp.bfloat16), "pb": pb,
        "sw": sw.astype(jnp.bfloat16), "sb": sb,
        "W": W_pad.astype(jnp.bfloat16),
    }


# ----------------------------- forward wrapper -----------------------------
def span_scorer_forward(prep, x, y, *, span_affine_dim, n_out,
                        tile_lp=256, tile_ls=512):
    """x: [B, Lp, hidden_dim] (predicates), y: [B, Ls, span_dim] (spans).

    On v7x (64 MiB VMEM) prefer tile_lp=128, tile_ls=512 for large problems.
    """
    B, Lp, hidden_dim = x.shape
    _, Ls, span_dim = y.shape
    use_mlp = span_affine_dim > 0
    d_pad = prep["W"].shape[-1]

    # Tiling: Ls lane-dense (multiple of 128), Lp sublane-aligned (multiple of 8).
    tile_ls = _round_up(max(128, min(tile_ls, _round_up(Ls, 128))), 128)
    ls_pad = _round_up(Ls, tile_ls)
    num_ls = ls_pad // tile_ls
    tile_lp = _round_up(max(8, min(tile_lp, _round_up(Lp, 8))), 8)
    lp_pad = _round_up(Lp, tile_lp)
    num_lp = lp_pad // tile_lp

    x_pad = jnp.pad(x, ((0, 0), (0, lp_pad - Lp), (0, 0))) if lp_pad != Lp else x
    y_pad = jnp.pad(y, ((0, 0), (0, ls_pad - Ls), (0, 0))) if ls_pad != Ls else y

    # ---------------- stage 1: span MLP + U[b,o] = W[o] @ span'^T ----------------
    vmem1 = _vmem_limit([
        2 * tile_ls * span_dim * 4,          # y block (double buffered)
        2 * span_dim * d_pad * 2,            # sw (bf16)
        2 * d_pad * 4,                       # sb
        2 * n_out * d_pad * d_pad * 2,       # W (bf16)
        2 * n_out * d_pad * tile_ls * 2,     # U out (bf16)
        tile_ls * d_pad * 10,                # h f32 + transpose + bf16 copy
        d_pad * tile_ls * 4,                 # per-head f32 result
    ])
    u = pl.pallas_call(
        functools.partial(_span_prep_kernel, n_out=n_out, apply_act=use_mlp),
        out_shape=jax.ShapeDtypeStruct((B, n_out, d_pad, ls_pad), jnp.bfloat16),
        grid_spec=pltpu.PrefetchScalarGridSpec(
            num_scalar_prefetch=0,
            grid=(B, num_ls),
            in_specs=[
                pl.BlockSpec((1, tile_ls, span_dim), lambda b, j: (b, j, 0)),
                pl.BlockSpec((span_dim, d_pad), lambda b, j: (0, 0)),
                pl.BlockSpec((1, d_pad), lambda b, j: (0, 0)),
                pl.BlockSpec((n_out, d_pad, d_pad), lambda b, j: (0, 0, 0)),
            ],
            out_specs=pl.BlockSpec((1, n_out, d_pad, tile_ls),
                                   lambda b, j: (b, 0, 0, j)),
        ),
        compiler_params=pltpu.CompilerParams(
            dimension_semantics=("parallel", "parallel"),
            vmem_limit_bytes=vmem1),
    )(y_pad, prep["sw"], prep["sb"], prep["W"])

    # ---------------- stage 2: predicate MLP + biaffine scores ----------------
    vmem2 = _vmem_limit([
        2 * tile_lp * hidden_dim * 4,        # x block
        2 * hidden_dim * d_pad * 2,          # pw (bf16)
        2 * d_pad * 4,                       # pb
        2 * n_out * d_pad * tile_ls * 2,     # U block (bf16)
        2 * n_out * tile_lp * tile_ls * 4,   # output block (f32)
        tile_lp * d_pad * 6,                 # h f32 + p_ext bf16
        tile_lp * tile_ls * 4,               # per-head f32 result
    ])
    s = pl.pallas_call(
        functools.partial(_score_kernel, n_out=n_out, apply_act=use_mlp),
        out_shape=jax.ShapeDtypeStruct((B, n_out, lp_pad, ls_pad), jnp.float32),
        grid_spec=pltpu.PrefetchScalarGridSpec(
            num_scalar_prefetch=0,
            grid=(B, num_lp, num_ls),
            in_specs=[
                pl.BlockSpec((1, tile_lp, hidden_dim), lambda b, i, j: (b, i, 0)),
                pl.BlockSpec((hidden_dim, d_pad), lambda b, i, j: (0, 0)),
                pl.BlockSpec((1, d_pad), lambda b, i, j: (0, 0)),
                pl.BlockSpec((1, n_out, d_pad, tile_ls), lambda b, i, j: (b, 0, 0, j)),
            ],
            out_specs=pl.BlockSpec((1, n_out, tile_lp, tile_ls),
                                   lambda b, i, j: (b, 0, i, j)),
        ),
        compiler_params=pltpu.CompilerParams(
            dimension_semantics=("parallel", "parallel", "parallel"),
            vmem_limit_bytes=vmem2),
    )(x_pad, prep["pw"], prep["pb"], u)

    # TODO(synk): consumers that accept the [B, n_out, Lp, Ls] layout directly
    # should skip the slice + permute below to avoid an extra HBM pass over
    # the dominant output tensor.
    if lp_pad != Lp or ls_pad != Ls:
        s = s[:, :, :Lp, :Ls]
    if n_out > 1:
        return jnp.transpose(s, (0, 2, 3, 1))   # [B, Lp, Ls, n_out]
    return s[:, 0]                              # [B, Lp, Ls]


# ----------------------------- deterministic params -----------------------------
def init_params(key, hidden_dim, span_dim, span_affine_dim, n_out):
    k1, k2, k3, k4, k5 = jax.random.split(key, 5)
    D = span_affine_dim if span_affine_dim > 0 else hidden_dim
    params = {}
    if span_affine_dim > 0:
        params["p_w"] = 0.1 * jax.random.normal(k1, (hidden_dim, span_affine_dim), jnp.float32)
        params["p_b"] = 0.1 * jax.random.normal(k2, (span_affine_dim,), jnp.float32)
        params["s_w"] = 0.1 * jax.random.normal(k3, (span_dim, span_affine_dim), jnp.float32)
        params["s_b"] = 0.1 * jax.random.normal(k4, (span_affine_dim,), jnp.float32)
    params["W"] = 0.1 * jax.random.normal(k5, (n_out, D + 1, D + 1), jnp.float32)
    return params


if __name__ == "__main__":
    # TODO(synk): nn.Dropout is treated as identity (inference / p = 0.0).
    B, Lp, Ls = 2, 8, 8
    hidden_dim, span_dim = 32, 48
    span_affine_dim = 16
    n_out = 3

    key = jax.random.PRNGKey(0)
    kx, ky, kp = jax.random.split(key, 3)
    x = jax.random.normal(kx, (B, Lp, hidden_dim), jnp.float32)
    y = jax.random.normal(ky, (B, Ls, span_dim), jnp.float32)
    params = init_params(kp, hidden_dim, span_dim, span_affine_dim, n_out)

    # --- main path: MLP -> MLP -> Biaffine, n_out > 1 ---
    prep = prepare_params(params, hidden_dim=hidden_dim, span_dim=span_dim,
                          span_affine_dim=span_affine_dim, n_out=n_out)
    fwd = jax.jit(functools.partial(span_scorer_forward,
                                    span_affine_dim=span_affine_dim, n_out=n_out))
    out = jax.block_until_ready(fwd(prep, x, y))
    assert out.shape == (B, Lp, Ls, n_out), out.shape

    def ref_mlp(params, x, y):
        p = jnp.einsum("bld,dh->blh", x, params["p_w"]) + params["p_b"]
        p = jnp.where(p > 0, p, 0.1 * p)
        s = jnp.einsum("bld,dh->blh", y, params["s_w"]) + params["s_b"]
        s = jnp.where(s > 0, s, 0.1 * s)
        pe = jnp.concatenate([p, jnp.ones(p.shape[:-1] + (1,), p.dtype)], -1)
        se = jnp.concatenate([s, jnp.ones(s.shape[:-1] + (1,), s.dtype)], -1)
        r = jnp.einsum("bxi,oij,byj->boxy", pe, params["W"], se)
        return jnp.transpose(r, (0, 2, 3, 1))

    ref_out = ref_mlp(params, x, y)
    err = float(jnp.max(jnp.abs(out - ref_out)))
    tol = 5e-2 * float(jnp.max(jnp.abs(ref_out))) + 5e-2   # bf16 MXU operands, f32 acc
    assert err <= tol, (err, tol)

    # --- secondary path: no MLP (span_affine_dim == 0), n_out == 1 ---
    y0 = jax.random.normal(jax.random.PRNGKey(2), (B, Ls, hidden_dim), jnp.float32)
    params0 = init_params(jax.random.PRNGKey(1), hidden_dim, hidden_dim, 0, 1)
    prep0 = prepare_params(params0, hidden_dim=hidden_dim, span_dim=hidden_dim,
                           span_affine_dim=0, n_out=1)
    fwd0 = jax.jit(functools.partial(span_scorer_forward,
                                     span_affine_dim=0, n_out=1))
    out0 = jax.block_until_ready(fwd0(prep0, x, y0))
    assert out0.shape == (B, Lp, Ls), out0.shape

    def ref_nomlp(W, x, y):
        pe = jnp.concatenate([x, jnp.ones(x.shape[:-1] + (1,), x.dtype)], -1)
        se = jnp.concatenate([y, jnp.ones(y.shape[:-1] + (1,), y.dtype)], -1)
        return jnp.einsum("bxi,oij,byj->boxy", pe, W, se)[:, 0]

    ref_out0 = ref_nomlp(params0["W"], x, y0)
    err0 = float(jnp.max(jnp.abs(out0 - ref_out0)))
    tol0 = 5e-2 * float(jnp.max(jnp.abs(ref_out0))) + 5e-2
    assert err0 <= tol0, (err0, tol0)

    print("KERNEL_OK")
</pallas_src>

<mosaic_0001>
module attributes {stable_mosaic.version = 11 : i64} {
  func.func @_span_prep_kernel(%arg0: i32, %arg1: i32, %arg2: memref<1x128x48xf32, #tpu.memory_space<vmem>>, %arg3: memref<48x128xbf16, #tpu.memory_space<vmem>>, %arg4: memref<1x128xf32, #tpu.memory_space<vmem>>, %arg5: memref<3x128x128xbf16, #tpu.memory_space<vmem>>, %arg6: memref<1x3x128x128xbf16, #tpu.memory_space<vmem>>) attributes {dimension_semantics = [#tpu.dimension_semantics<parallel>, #tpu.dimension_semantics<parallel>], iteration_bounds = array<i64: 2, 1>, scalar_prefetch = 0 : i64, scratch_operands = 0 : i64, tpu.core_type = #tpu.core_type<tc>, window_params = [{transform_indices = @transform_0, window_bounds = array<i64: 1, 128, 48>}, {pipeline_mode = #tpu.pipeline_mode<synchronous>, transform_indices = @transform_1, window_bounds = array<i64: 48, 128>}, {pipeline_mode = #tpu.pipeline_mode<synchronous>, transform_indices = @transform_2, window_bounds = array<i64: 1, 128>}, {pipeline_mode = #tpu.pipeline_mode<synchronous>, transform_indices = @transform_3, window_bounds = array<i64: 3, 128, 128>}, {transform_indices = @transform_4, window_bounds = array<i64: 1, 3, 128, 128>}]} {
    %c0 = arith.constant 0 : index
    %c0_0 = arith.constant 0 : index
    %c0_1 = arith.constant 0 : index
    %0 = vector.load %arg2[%c0, %c0_0, %c0_1] : memref<1x128x48xf32, #tpu.memory_space<vmem>>, vector<1x128x48xf32>
    %1 = vector.shape_cast %0 : vector<1x128x48xf32> to vector<128x48xf32>
    %2 = arith.truncf %1 : vector<128x48xf32> to vector<128x48xbf16>
    %c0_2 = arith.constant 0 : index
    %c0_3 = arith.constant 0 : index
    %3 = vector.load %arg3[%c0_2, %c0_3] : memref<48x128xbf16, #tpu.memory_space<vmem>>, vector<48x128xbf16>
    %cst = arith.constant dense<0.000000e+00> : vector<128x128xf32>
    %4 = tpu.matmul %2, %3, %cst {dimension_numbers = #tpu.dot_dimension_numbers<[1], [0], [0], [1], [0, 0, 1, 1], [], []>} : vector<128x48xbf16>, vector<48x128xbf16>, vector<128x128xf32> -> vector<128x128xf32>
    %c0_4 = arith.constant 0 : index
    %c0_5 = arith.constant 0 : index
    %5 = vector.load %arg4[%c0_4, %c0_5] : memref<1x128xf32, #tpu.memory_space<vmem>>, vector<1x128xf32>
    %6 = vector.broadcast %5 : vector<1x128xf32> to vector<128x128xf32>
    %7 = arith.addf %4, %6 : vector<128x128xf32>
    %cst_6 = arith.constant 0.000000e+00 : f32
    %8 = vector.broadcast %cst_6 : f32 to vector<128x128xf32>
    %9 = arith.cmpf ogt, %7, %8 : vector<128x128xf32>
    %cst_7 = arith.constant 1.000000e-01 : f32
    %10 = vector.broadcast %cst_7 : f32 to vector<128x128xf32>
    %11 = arith.mulf %10, %7 : vector<128x128xf32>
    %12 = arith.select %9, %7, %11 : vector<128x128xi1>, vector<128x128xf32>
    %13 = tpu.transpose %12, [1, 0] : vector<128x128xf32> -> vector<128x128xf32>
    %14 = arith.truncf %13 : vector<128x128xf32> to vector<128x128xbf16>
    %c0_8 = arith.constant 0 : index
    %c0_9 = arith.constant 0 : index
    %c0_10 = arith.constant 0 : index
    %15 = vector.load %arg5[%c0_8, %c0_9, %c0_10] : memref<3x128x128xbf16, #tpu.memory_space<vmem>>, vector<1x128x128xbf16>
    %16 = vector.shape_cast %15 : vector<1x128x128xbf16> to vector<128x128xbf16>
    %cst_11 = arith.constant dense<0.000000e+00> : vector<128x128xf32>
    %17 = tpu.matmul %16, %14, %cst_11 {dimension_numbers = #tpu.dot_dimension_numbers<[1], [0], [0], [1], [0, 0, 1, 1], [], []>} : vector<128x128xbf16>, vector<128x128xbf16>, vector<128x128xf32> -> vector<128x128xf32>
    %18 = arith.truncf %17 : vector<128x128xf32> to vector<128x128xbf16>
    %c0_12 = arith.constant 0 : index
    %c0_13 = arith.constant 0 : index
    %c0_14 = arith.constant 0 : index
    %c0_15 = arith.constant 0 : index
    %19 = vector.load %arg6[%c0_12, %c0_13, %c0_14, %c0_15] : memref<1x3x128x128xbf16, #tpu.memory_space<vmem>>, vector<1x1x128x128xbf16>
    %20 = vector.shape_cast %19 : vector<1x1x128x128xbf16> to vector<128x128xbf16>
    %21 = vector.shape_cast %18 : vector<128x128xbf16> to vector<1x1x128x128xbf16>
    tpu.vector_store %arg6[%c0_12, %c0_13, %c0_14, %c0_15], %21 {strides = array<i32>} : memref<1x3x128x128xbf16, #tpu.memory_space<vmem>>, vector<1x1x128x128xbf16>,
    %c1 = arith.constant 1 : index
    %c0_16 = arith.constant 0 : index
    %c0_17 = arith.constant 0 : index
    %22 = vector.load %arg5[%c1, %c0_16, %c0_17] : memref<3x128x128xbf16, #tpu.memory_space<vmem>>, vector<1x128x128xbf16>
    %23 = vector.shape_cast %22 : vector<1x128x128xbf16> to vector<128x128xbf16>
    %cst_18 = arith.constant dense<0.000000e+00> : vector<128x128xf32>
    %24 = tpu.matmul %23, %14, %cst_18 {dimension_numbers = #tpu.dot_dimension_numbers<[1], [0], [0], [1], [0, 0, 1, 1], [], []>} : vector<128x128xbf16>, vector<128x128xbf16>, vector<128x128xf32> -> vector<128x128xf32>
    %25 = arith.truncf %24 : vector<128x128xf32> to vector<128x128xbf16>
    %c0_19 = arith.constant 0 : index
    %c1_20 = arith.constant 1 : index
    %c0_21 = arith.constant 0 : index
    %c0_22 = arith.constant 0 : index
    %26 = vector.load %arg6[%c0_19, %c1_20, %c0_21, %c0_22] : memref<1x3x128x128xbf16, #tpu.memory_space<vmem>>, vector<1x1x128x128xbf16>
    %27 = vector.shape_cast %26 : vector<1x1x128x128xbf16> to vector<128x128xbf16>
    %28 = vector.shape_cast %25 : vector<128x128xbf16> to vector<1x1x128x128xbf16>
    tpu.vector_store %arg6[%c0_19, %c1_20, %c0_21, %c0_22], %28 {strides = array<i32>} : memref<1x3x128x128xbf16, #tpu.memory_space<vmem>>, vector<1x1x128x128xbf16>,
    %c2 = arith.constant 2 : index
    %c0_23 = arith.constant 0 : index
    %c0_24 = arith.constant 0 : index
    %29 = vector.load %arg5[%c2, %c0_23, %c0_24] : memref<3x128x128xbf16, #tpu.memory_space<vmem>>, vector<1x128x128xbf16>
    %30 = vector.shape_cast %29 : vector<1x128x128xbf16> to vector<128x128xbf16>
    %cst_25 = arith.constant dense<0.000000e+00> : vector<128x128xf32>
    %31 = tpu.matmul %30, %14, %cst_25 {dimension_numbers = #tpu.dot_dimension_numbers<[1], [0], [0], [1], [0, 0, 1, 1], [], []>} : vector<128x128xbf16>, vector<128x128xbf16>, vector<128x128xf32> -> vector<128x128xf32>
    %32 = arith.truncf %31 : vector<128x128xf32> to vector<128x128xbf16>
    %c0_26 = arith.constant 0 : index
    %c2_27 = arith.constant 2 : index
    %c0_28 = arith.constant 0 : index
    %c0_29 = arith.constant 0 : index
    %33 = vector.load %arg6[%c0_26, %c2_27, %c0_28, %c0_29] : memref<1x3x128x128xbf16, #tpu.memory_space<vmem>>, vector<1x1x128x128xbf16>
    %34 = vector.shape_cast %33 : vector<1x1x128x128xbf16> to vector<128x128xbf16>
    %35 = vector.shape_cast %32 : vector<128x128xbf16> to vector<1x1x128x128xbf16>
    tpu.vector_store %arg6[%c0_26, %c2_27, %c0_28, %c0_29], %35 {strides = array<i32>} : memref<1x3x128x128xbf16, #tpu.memory_space<vmem>>, vector<1x1x128x128xbf16>,
    return
  }
  func.func @transform_0(%arg0: i32, %arg1: i32) -> (i32, i32, i32) {
    %c0_i32 = arith.constant 0 : i32
    %c0_i32_0 = arith.constant 0 : i32
    return %arg0, %arg1, %c0_i32 : i32, i32, i32
  }
  func.func @transform_1(%arg0: i32, %arg1: i32) -> (i32, i32) {
    %c0_i32 = arith.constant 0 : i32
    %c0_i32_0 = arith.constant 0 : i32
    %c0_i32_1 = arith.constant 0 : i32
    return %c0_i32, %c0_i32_0 : i32, i32
  }
  func.func @transform_2(%arg0: i32, %arg1: i32) -> (i32, i32) {
    %c0_i32 = arith.constant 0 : i32
    %c0_i32_0 = arith.constant 0 : i32
    %c0_i32_1 = arith.constant 0 : i32
    return %c0_i32, %c0_i32_0 : i32, i32
  }
  func.func @transform_3(%arg0: i32, %arg1: i32) -> (i32, i32, i32) {
    %c0_i32 = arith.constant 0 : i32
    %c0_i32_0 = arith.constant 0 : i32
    %c0_i32_1 = arith.constant 0 : i32
    %c0_i32_2 = arith.constant 0 : i32
    return %c0_i32, %c0_i32_0, %c0_i32_1 : i32, i32, i32
  }
  func.func @transform_4(%arg0: i32, %arg1: i32) -> (i32, i32, i32, i32) {
    %c0_i32 = arith.constant 0 : i32
    %c0_i32_0 = arith.constant 0 : i32
    %c0_i32_1 = arith.constant 0 : i32
    return %arg0, %c0_i32, %c0_i32_0, %arg1 : i32, i32, i32, i32
  }
}

module attributes {stable_mosaic.version = 11 : i64} {
  func.func @_score_kernel(%arg0: i32, %arg1: i32, %arg2: i32, %arg3: memref<1x8x32xf32, #tpu.memory_space<vmem>>, %arg4: memref<32x128xbf16, #tpu.memory_space<vmem>>, %arg5: memref<1x128xf32, #tpu.memory_space<vmem>>, %arg6: memref<1x3x128x128xbf16, #tpu.memory_space<vmem>>, %arg7: memref<1x3x8x128xf32, #tpu.memory_space<vmem>>) attributes {dimension_semantics = [#tpu.dimension_semantics<parallel>, #tpu.dimension_semantics<parallel>, #tpu.dimension_semantics<parallel>], iteration_bounds = array<i64: 2, 1, 1>, scalar_prefetch = 0 : i64, scratch_operands = 0 : i64, tpu.core_type = #tpu.core_type<tc>, window_params = [{transform_indices = @transform_0, window_bounds = array<i64: 1, 8, 32>}, {pipeline_mode = #tpu.pipeline_mode<synchronous>, transform_indices = @transform_1, window_bounds = array<i64: 32, 128>}, {pipeline_mode = #tpu.pipeline_mode<synchronous>, transform_indices = @transform_2, window_bounds = array<i64: 1, 128>}, {transform_indices = @transform_3, window_bounds = array<i64: 1, 3, 128, 128>}, {transform_indices = @transform_4, window_bounds = array<i64: 1, 3, 8, 128>}]} {
    %c0 = arith.constant 0 : index
    %c0_0 = arith.constant 0 : index
    %c0_1 = arith.constant 0 : index
    %0 = vector.load %arg3[%c0, %c0_0, %c0_1] : memref<1x8x32xf32, #tpu.memory_space<vmem>>, vector<1x8x32xf32>
    %1 = vector.shape_cast %0 : vector<1x8x32xf32> to vector<8x32xf32>
    %2 = arith.truncf %1 : vector<8x32xf32> to vector<8x32xbf16>
    %c0_2 = arith.constant 0 : index
    %c0_3 = arith.constant 0 : index
    %3 = vector.load %arg4[%c0_2, %c0_3] : memref<32x128xbf16, #tpu.memory_space<vmem>>, vector<32x128xbf16>
    %cst = arith.constant dense<0.000000e+00> : vector<8x128xf32>
    %4 = tpu.matmul %2, %3, %cst {dimension_numbers = #tpu.dot_dimension_numbers<[1], [0], [0], [1], [0, 0, 1, 1], [], []>} : vector<8x32xbf16>, vector<32x128xbf16>, vector<8x128xf32> -> vector<8x128xf32>
    %c0_4 = arith.constant 0 : index
    %c0_5 = arith.constant 0 : index
    %5 = vector.load %arg5[%c0_4, %c0_5] : memref<1x128xf32, #tpu.memory_space<vmem>>, vector<1x128xf32>
    %6 = vector.broadcast %5 : vector<1x128xf32> to vector<8x128xf32>
    %7 = arith.addf %4, %6 : vector<8x128xf32>
    %cst_6 = arith.constant 0.000000e+00 : f32
    %8 = vector.broadcast %cst_6 : f32 to vector<8x128xf32>
    %9 = arith.cmpf ogt, %7, %8 : vector<8x128xf32>
    %cst_7 = arith.constant 1.000000e-01 : f32
    %10 = vector.broadcast %cst_7 : f32 to vector<8x128xf32>
    %11 = arith.mulf %10, %7 : vector<8x128xf32>
    %12 = arith.select %9, %7, %11 : vector<8x128xi1>, vector<8x128xf32>
    %13 = arith.truncf %12 : vector<8x128xf32> to vector<8x128xbf16>
    %c0_8 = arith.constant 0 : index
    %c0_9 = arith.constant 0 : index
    %c0_10 = arith.constant 0 : index
    %c0_11 = arith.constant 0 : index
    %14 = vector.load %arg6[%c0_8, %c0_9, %c0_10, %c0_11] : memref<1x3x128x128xbf16, #tpu.memory_space<vmem>>, vector<1x1x128x128xbf16>
    %15 = vector.shape_cast %14 : vector<1x1x128x128xbf16> to vector<128x128xbf16>
    %cst_12 = arith.constant dense<0.000000e+00> : vector<8x128xf32>
    %16 = tpu.matmul %13, %15, %cst_12 {dimension_numbers = #tpu.dot_dimension_numbers<[1], [0], [0], [1], [0, 0, 1, 1], [], []>} : vector<8x128xbf16>, vector<128x128xbf16>, vector<8x128xf32> -> vector<8x128xf32>
    %c0_13 = arith.constant 0 : index
    %c0_14 = arith.constant 0 : index
    %c0_15 = arith.constant 0 : index
    %c0_16 = arith.constant 0 : index
    %17 = vector.load %arg7[%c0_13, %c0_14, %c0_15, %c0_16] : memref<1x3x8x128xf32, #tpu.memory_space<vmem>>, vector<1x1x8x128xf32>
    %18 = vector.shape_cast %17 : vector<1x1x8x128xf32> to vector<8x128xf32>
    %19 = vector.shape_cast %16 : vector<8x128xf32> to vector<1x1x8x128xf32>
    tpu.vector_store %arg7[%c0_13, %c0_14, %c0_15, %c0_16], %19 {strides = array<i32>} : memref<1x3x8x128xf32, #tpu.memory_space<vmem>>, vector<1x1x8x128xf32>,
    %c0_17 = arith.constant 0 : index
    %c1 = arith.constant 1 : index
    %c0_18 = arith.constant 0 : index
    %c0_19 = arith.constant 0 : index
    %20 = vector.load %arg6[%c0_17, %c1, %c0_18, %c0_19] : memref<1x3x128x128xbf16, #tpu.memory_space<vmem>>, vector<1x1x128x128xbf16>
    %21 = vector.shape_cast %20 : vector<1x1x128x128xbf16> to vector<128x128xbf16>
    %cst_20 = arith.constant dense<0.000000e+00> : vector<8x128xf32>
    %22 = tpu.matmul %13, %21, %cst_20 {dimension_numbers = #tpu.dot_dimension_numbers<[1], [0], [0], [1], [0, 0, 1, 1], [], []>} : vector<8x128xbf16>, vector<128x128xbf16>, vector<8x128xf32> -> vector<8x128xf32>
    %c0_21 = arith.constant 0 : index
    %c1_22 = arith.constant 1 : index
    %c0_23 = arith.constant 0 : index
    %c0_24 = arith.constant 0 : index
    %23 = vector.load %arg7[%c0_21, %c1_22, %c0_23, %c0_24] : memref<1x3x8x128xf32, #tpu.memory_space<vmem>>, vector<1x1x8x128xf32>
    %24 = vector.shape_cast %23 : vector<1x1x8x128xf32> to vector<8x128xf32>
    %25 = vector.shape_cast %22 : vector<8x128xf32> to vector<1x1x8x128xf32>
    tpu.vector_store %arg7[%c0_21, %c1_22, %c0_23, %c0_24], %25 {strides = array<i32>} : memref<1x3x8x128xf32, #tpu.memory_space<vmem>>, vector<1x1x8x128xf32>,
    %c0_25 = arith.constant 0 : index
    %c2 = arith.constant 2 : index
    %c0_26 = arith.constant 0 : index
    %c0_27 = arith.constant 0 : index
    %26 = vector.load %arg6[%c0_25, %c2, %c0_26, %c0_27] : memref<1x3x128x128xbf16, #tpu.memory_space<vmem>>, vector<1x1x128x128xbf16>
    %27 = vector.shape_cast %26 : vector<1x1x128x128xbf16> to vector<128x128xbf16>
    %cst_28 = arith.constant dense<0.000000e+00> : vector<8x128xf32>
    %28 = tpu.matmul %13, %27, %cst_28 {dimension_numbers = #tpu.dot_dimension_numbers<[1], [0], [0], [1], [0, 0, 1, 1], [], []>} : vector<8x128xbf16>, vector<128x128xbf16>, vector<8x128xf32> -> vector<8x128xf32>
    %c0_29 = arith.constant 0 : index
    %c2_30 = arith.constant 2 : index
    %c0_31 = arith.constant 0 : index
    %c0_32 = arith.constant 0 : index
    %29 = vector.load %arg7[%c0_29, %c2_30, %c0_31, %c0_32] : memref<1x3x8x128xf32, #tpu.memory_space<vmem>>, vector<1x1x8x128xf32>
    %30 = vector.shape_cast %29 : vector<1x1x8x128xf32> to vector<8x128xf32>
    %31 = vector.shape_cast %28 : vector<8x128xf32> to vector<1x1x8x128xf32>
    tpu.vector_store %arg7[%c0_29, %c2_30, %c0_31, %c0_32], %31 {strides = array<i32>} : memref<1x3x8x128xf32, #tpu.memory_space<vmem>>, vector<1x1x8x128xf32>,
    return
  }
  func.func @transform_0(%arg0: i32, %arg1: i32, %arg2: i32) -> (i32, i32, i32) {
    %c0_i32 = arith.constant 0 : i32
    %c0_i32_0 = arith.constant 0 : i32
    return %arg0, %arg1, %c0_i32 : i32, i32, i32
  }
  func.func @transform_1(%arg0: i32, %arg1: i32, %arg2: i32) -> (i32, i32) {
    %c0_i32 = arith.constant 0 : i32
    %c0_i32_0 = arith.constant 0 : i32
    %c0_i32_1 = arith.constant 0 : i32
    return %c0_i32, %c0_i32_0 : i32, i32
  }
  func.func @transform_2(%arg0: i32, %arg1: i32, %arg2: i32) -> (i32, i32) {
    %c0_i32 = arith.constant 0 : i32
    %c0_i32_0 = arith.constant 0 : i32
    %c0_i32_1 = arith.constant 0 : i32
    return %c0_i32, %c0_i32_0 : i32, i32
  }
  func.func @transform_3(%arg0: i32, %arg1: i32, %arg2: i32) -> (i32, i32, i32, i32) {
    %c0_i32 = arith.constant 0 : i32
    %c0_i32_0 = arith.constant 0 : i32
    %c0_i32_1 = arith.constant 0 : i32
    return %arg0, %c0_i32, %c0_i32_0, %arg2 : i32, i32, i32, i32
  }
  func.func @transform_4(%arg0: i32, %arg1: i32, %arg2: i32) -> (i32, i32, i32, i32) {
    %c0_i32 = arith.constant 0 : i32
    %c0_i32_0 = arith.constant 0 : i32
    return %arg0, %c0_i32, %arg1, %arg2 : i32, i32, i32, i32
  }
}

</mosaic_0001>

<llo_original>
// kernel: span_scorer_forward.3
$region0: #{span_scorer_forward.3}
  #allocation0 [shape = 'u32[]', space=smem, size = 0x4, offset = 0x4, fixed_abs, tag = 'smem constant byte address 0x4 - core index']
  #allocation1 [shape = 'u32[72,128]{1,0:T(1,128)}', space=vmem, size = 0x9000, scoped, tag = 'internal scratch']
  %s0 = inlined_call_operand.vmem [shape: f32[2,8,32], index: 0, kind: input, shape index: {}]
  %s1 = inlined_call_operand.vmem [shape: bf16[32,128], index: 1, kind: input, shape index: {}]
  %s2 = inlined_call_operand.vmem [shape: f32[1,128], index: 2, kind: input, shape index: {}]
  %s3 = inlined_call_operand.vmem [shape: bf16[2,3,128,128], index: 3, kind: input, shape index: {}]
  %s4 = inlined_call_operand.vmem [shape: f32[2,3,8,128], index: 4, kind: output, shape index: {}]
  %s5 = sld [smem:[#allocation0]]
  $region49: #{span_scorer_forward.3} parent=0
    _
  %s7 = ssub.s32 1, %s5
  %s8 = scalar_select 0, %s7, %s5
  loop: start=0, step=1, limit=4
  $region2: #{span_scorer_forward.3} parent=0 // loop_pre_header
    _
  $region3: #{span_scorer_forward.3} parent=0 // loop_header
    %s10 = sphi 0, %s14
    %p11 = scmp.ge.s32.totalorder %s10, 4
    %s17 = sphi 0, %s36
    %s18 = sphi 0, %s32
    %s19 = sphi 0, %s28
    %s20 = sphi 0, %s17
    %s21 = sphi 0, %s18
    %s22 = sphi 0, %s19
    %s23 = sphi 0, %s20
    %s24 = sphi 0, %s21
    %s25 = sphi 0, %s22
    %s41 = sphi 0, %s43
    %s44 = sphi 0, %s41
    %s45 = sphi 0, %s44
    %s61 = sphi 0, %s45
    %s65 = sphi 0, %s65
    %s67 = sphi 0, %s65
    %s68 = sphi 0, %s67
    %s82 = sphi 0, %s68
    %s86 = sphi 0, %s86
    %s88 = sphi 0, %s86
    %s89 = sphi 0, %s88
    %s103 = sphi 0, %s89
    %s111 = sphi 0, %s113
    %s114 = sphi 0, %s111
    %s115 = sphi 0, %s114
    %s131 = sphi 0, %s115
    %s141 = sphi 0, %s143
    %s144 = sphi 0, %s141
    %s145 = sphi 0, %s144
    %s161 = sphi 0, %s145
  $region4: #{span_scorer_forward.3} parent=0 // loop_header_branch
    %13 = sbr.rel (%p11) target = $region8
  $region5: #{span_scorer_forward.3} parent=0 // loop_body
    %s15 = ssub.s32 %s10, 1
    %s16 = ssub.s32 %s10, 2
    %s26 = sadd.s32 1, %s19
    %p27 = scmp.ge.s32.totalorder %s26, 1
    %s28 = scalar_select %p27, 0, %s26
    %s29 = sadd.s32 1, %s18
    %s30 = scalar_select %p27, %s29, %s18
    %p31 = scmp.ge.s32.totalorder %s30, 1
    %s32 = scalar_select %p31, 0, %s30
    %s33 = sadd.s32 1, %s17
    %s34 = scalar_select %p31, %s33, %s17
    %p35 = scmp.ge.s32.totalorder %s34, 2
    %s36 = scalar_select %p35, 0, %s34
    %s37 = ssub.s32 %s17, %s36
    %s38 = ssub.s32 %s18, %s32
    %s39 = sor.u32 %s37, %s38
    %p40 = scmp.eq.s32.totalorder %s39, 0
    %s42 = sadd.s32 %s41, 1
    %s43 = scalar_select %p40, %s41, %s42
    %p46 = pneg %p40
    %p47 = scmp.eq.s32.totalorder %s10, 1
    %p48 = por %p46, %p47
    %p49 = scmp.ne.s32.totalorder %s41, %s44
    %p50 = scmp.eq.s32.totalorder %s10, 0
    %p51 = por %p49, %p50
    %p52 = scmp.ne.s32.totalorder %s41, %s44
    %p53 = scmp.eq.s32.totalorder %s15, 1
    %p54 = por %p52, %p53
    %p55 = scmp.ne.s32.totalorder %s44, %s45
    %p56 = scmp.eq.s32.totalorder %s15, 0
    %p57 = por %p55, %p56
    %p58 = scmp.ne.s32.totalorder %s44, %s45
    %p59 = scmp.eq.s32.totalorder %s16, 1
    %p60 = por %p58, %p59
    %p62 = scmp.ne.s32.totalorder %s45, %s61
    %p63 = scmp.eq.s32.totalorder %s16, 0
    %p64 = por %p62, %p63
    %s66 = sadd.s32 %s65, 1
    %p69 = scmp.eq.s32.totalorder %s10, 1
    %p70 = scmp.ne.s32.totalorder %s65, %s67
    %p71 = scmp.eq.s32.totalorder %s10, 0
    %p72 = por %p70, %p71
    %p73 = scmp.ne.s32.totalorder %s65, %s67
    %p74 = scmp.eq.s32.totalorder %s15, 1
    %p75 = por %p73, %p74
    %p76 = scmp.ne.s32.totalorder %s67, %s68
    %p77 = scmp.eq.s32.totalorder %s15, 0
    %p78 = por %p76, %p77
    %p79 = scmp.ne.s32.totalorder %s67, %s68
    %p80 = scmp.eq.s32.totalorder %s16, 1
    %p81 = por %p79, %p80
    %p83 = scmp.ne.s32.totalorder %s68, %s82
    %p84 = scmp.eq.s32.totalorder %s16, 0
    %p85 = por %p83, %p84
    %s87 = sadd.s32 %s86, 1
    %p90 = scmp.eq.s32.totalorder %s10, 1
    %p91 = scmp.ne.s32.totalorder %s86, %s88
    %p92 = scmp.eq.s32.totalorder %s10, 0
    %p93 = por %p91, %p92
    %p94 = scmp.ne.s32.totalorder %s86, %s88
    %p95 = scmp.eq.s32.totalorder %s15, 1
    %p96 = por %p94, %p95
    %p97 = scmp.ne.s32.totalorder %s88, %s89
    %p98 = scmp.eq.s32.totalorder %s15, 0
    %p99 = por %p97, %p98
    %p100 = scmp.ne.s32.totalorder %s88, %s89
    %p101 = scmp.eq.s32.totalorder %s16, 1
    %p102 = por %p100, %p101
    %p104 = scmp.ne.s32.totalorder %s89, %s103
    %p105 = scmp.eq.s32.totalorder %s16, 0
    %p106 = por %p104, %p105
    %s107 = ssub.s32 %s17, %s36
    %s108 = ssub.s32 %s19, %s28
    %s109 = sor.u32 %s107, %s108
    %p110 = scmp.eq.s32.totalorder %s109, 0
    %s112 = sadd.s32 %s111, 1
    %s113 = scalar_select %p110, %s111, %s112
    %p116 = pneg %p110
    %p117 = scmp.eq.s32.totalorder %s10, 1
    %p118 = por %p116, %p117
    %p119 = scmp.ne.s32.totalorder %s111, %s114
    %p120 = scmp.eq.s32.totalorder %s10, 0
    %p121 = por %p119, %p120
    %p122 = scmp.ne.s32.totalorder %s111, %s114
    %p123 = scmp.eq.s32.totalorder %s15, 1
    %p124 = por %p122, %p123
    %p125 = scmp.ne.s32.totalorder %s114, %s115
    %p126 = scmp.eq.s32.totalorder %s15, 0
    %p127 = por %p125, %p126
    %p128 = scmp.ne.s32.totalorder %s114, %s115
    %p129 = scmp.eq.s32.totalorder %s16, 1
    %p130 = por %p128, %p129
    %p132 = scmp.ne.s32.totalorder %s115, %s131
    %p133 = scmp.eq.s32.totalorder %s16, 0
    %p134 = por %p132, %p133
    %s135 = ssub.s32 %s17, %s36
    %s136 = ssub.s32 %s18, %s32
    %s137 = sor.u32 %s135, %s136
    %s138 = ssub.s32 %s19, %s28
    %s139 = sor.u32 %s137, %s138
    %p140 = scmp.eq.s32.totalorder %s139, 0
    %s142 = sadd.s32 %s141, 1
    %s143 = scalar_select %p140, %s141, %s142
    %p146 = pneg %p140
    %p147 = scmp.eq.s32.totalorder %s10, 1
    %p148 = por %p146, %p147
    %p149 = scmp.ne.s32.totalorder %s141, %s144
    %p150 = scmp.eq.s32.totalorder %s10, 0
    %p151 = por %p149, %p150
    %p152 = scmp.ne.s32.totalorder %s141, %s144
    %p153 = scmp.eq.s32.totalorder %s15, 1
    %p154 = por %p152, %p153
    %p155 = scmp.ne.s32.totalorder %s144, %s145
    %p156 = scmp.eq.s32.totalorder %s15, 0
    %p157 = por %p155, %p156
    %p158 = scmp.ne.s32.totalorder %s144, %s145
    %p159 = scmp.eq.s32.totalorder %s16, 1
    %p160 = por %p158, %p159
    %p162 = scmp.ne.s32.totalorder %s145, %s161
    %p163 = scmp.eq.s32.totalorder %s16, 0
    %p164 = por %p162, %p163
    %p165 = scmp.le.s32.totalorder 1, %s10
    %p166 = scmp.lt.s32.totalorder %s10, 3
    %p167 = pnand %p165, %p166
    %p168 = pneg %p167
    // Predicated region
    $region9: #{span_scorer_forward.3} parent=5 // pred_check
      _
    $region10: #{span_scorer_forward.3} parent=5 // pred_check_branch
      %170 = sbr.rel (%p167) target = $region12
    $region11: #{span_scorer_forward.3} parent=5 // pred_region
      %s171 = ssub.s32 %s10, 1
      // Predicated region
      $region13: #{span_scorer_forward.3} parent=11 // pred_check
        %p172 = pneg %p78
      $region14: #{span_scorer_forward.3} parent=11 // pred_check_branch
        %174 = sbr.rel (%p172) target = $region16
      $region15: #{span_scorer_forward.3} parent=11 // pred_region
        _
      $region16: #{span_scorer_forward.3} parent=11 // pred_fallthru
        _
      // Predicated region
      $region17: #{span_scorer_forward.3} parent=11 // pred_check
        %p175 = pneg %p99
      $region18: #{span_scorer_forward.3} parent=11 // pred_check_branch
        %177 = sbr.rel (%p175) target = $region20
      $region19: #{span_scorer_forward.3} parent=11 // pred_region
        _
      $region20: #{span_scorer_forward.3} parent=11 // pred_fallthru
        _
    $region12: #{span_scorer_forward.3} parent=5 // pred_fallthru
      _
    %p178 = scmp.lt.s32.totalorder %s10, 2
    // Predicated region
    $region21: #{span_scorer_forward.3} parent=5 // pred_check
      %p179 = pneg %p178
    $region22: #{span_scorer_forward.3} parent=5 // pred_check_branch
      %181 = sbr.rel (%p179) target = $region24
    $region23: #{span_scorer_forward.3} parent=5 // pred_region
      // Predicated region
      $region25: #{span_scorer_forward.3} parent=23 // pred_check
        %p182 = pneg %p51
      $region26: #{span_scorer_forward.3} parent=23 // pred_check_branch
        %184 = sbr.rel (%p182) target = $region28
      $region27: #{span_scorer_forward.3} parent=23 // pred_region
        %p185 = scmp.lt.s32.totalorder %s17, 1
        %s186 = scalar_select %p185, %s17, 1
        %p187 = scmp.lt.s32.totalorder %s18, 0
        %s188 = scalar_select %p187, %s18, 0
        %s189 = sadd.s32 %s188, %s186
        %s190 = smul.addr %s189, 8
        %s191 = scalar_lea.vmem %s0, %s190
      $region28: #{span_scorer_forward.3} parent=23 // pred_fallthru
        _
      // Predicated region
      $region29: #{span_scorer_forward.3} parent=23 // pred_check
        %p192 = pneg %p121
      $region30: #{span_scorer_forward.3} parent=23 // pred_check_branch
        %194 = sbr.rel (%p192) target = $region32
      $region31: #{span_scorer_forward.3} parent=23 // pred_region
        %p195 = scmp.lt.s32.totalorder %s17, 1
        %s196 = scalar_select %p195, %s17, 1
        %p197 = scmp.lt.s32.totalorder %s19, 0
        %s198 = scalar_select %p197, %s19, 0
        %s199 = smul.addr %s196, 48
        %s200 = sadd.s32 %s198, %s199
        %s201 = smul.addr %s200, 4
        %s202 = scalar_lea.vmem %s3, %s201
      $region32: #{span_scorer_forward.3} parent=23 // pred_fallthru
        _
    $region24: #{span_scorer_forward.3} parent=5 // pred_fallthru
      _
    %p203 = scmp.le.s32.totalorder 1, %s10
    %p204 = scmp.lt.s32.totalorder %s10, 3
    %p205 = pnand %p203, %p204
    %p206 = pneg %p205
    // Predicated region
    $region33: #{span_scorer_forward.3} parent=5 // pred_check
      _
    $region34: #{span_scorer_forward.3} parent=5 // pred_check_branch
      %208 = sbr.rel (%p205) target = $region36
    $region35: #{span_scorer_forward.3} parent=5 // pred_region
      %s209 = ssub.s32 %s10, 1
      %p210 = scmp.lt.s32.totalorder %s20, 1
      %s211 = scalar_select %p210, %s20, 1
      %p212 = scmp.lt.s32.totalorder %s21, 0
      %s213 = scalar_select %p212, %s21, 0
      %s214 = sadd.s32 %s213, %s211
      %s215 = smul.addr %s214, 8
      %s216 = scalar_lea.vmem %s0, %s215
      %p217 = pneg %p57
      %p218 = pneg %p54
      %p219 = pneg %p78
      %p220 = pneg %p75
      %p221 = pneg %p99
      %p222 = pneg %p96
      %p223 = scmp.lt.s32.totalorder %s20, 1
      %s224 = scalar_select %p223, %s20, 1
      %p225 = scmp.lt.s32.totalorder %s22, 0
      %s226 = scalar_select %p225, %s22, 0
      %s227 = smul.addr %s224, 48
      %s228 = sadd.s32 %s226, %s227
      %s229 = smul.addr %s228, 4
      %s230 = scalar_lea.vmem %s3, %s229
      %p231 = pneg %p127
      %p232 = pneg %p124
      %p233 = pneg %p157
      %p234 = pneg %p154
      %p235 = scmp.lt.s32.totalorder %s20, 1
      %s236 = scalar_select %p235, %s20, 1
      %p237 = scmp.lt.s32.totalorder %s21, 0
      %s238 = scalar_select %p237, %s21, 0
      %p239 = scmp.lt.s32.totalorder %s22, 0
      %s240 = scalar_select %p239, %s22, 0
      %s241 = sadd.s32 %s240, %s238
      %s242 = smul.addr %s236, 3
      %s243 = sadd.s32 %s241, %s242
      %s244 = smul.addr %s243, 8
      %s245 = scalar_lea.vmem %s4, %s244
      %p246 = scmp.lt.s32.totalorder %s20, 1
      %s247 = scalar_select %p246, %s20, 1
      %p248 = scmp.lt.s32.totalorder %s21, 0
      %s249 = scalar_select %p248, %s21, 0
      %s250 = sadd.s32 %s249, %s247
      %s251 = smul.addr %s250, 8
      %s252 = scalar_lea.vmem %s0, %s251
      %p253 = scmp.lt.s32.totalorder %s20, 1
      %s254 = scalar_select %p253, %s20, 1
      %p255 = scmp.lt.s32.totalorder %s22, 0
      %s256 = scalar_select %p255, %s22, 0
      %s257 = smul.addr %s254, 48
      %s258 = sadd.s32 %s256, %s257
      %s259 = smul.addr %s258, 4
      %s260 = scalar_lea.vmem %s3, %s259
      %p261 = scmp.lt.s32.totalorder %s20, 1
      %s262 = scalar_select %p261, %s20, 1
      %p263 = scmp.lt.s32.totalorder %s21, 0
      %s264 = scalar_select %p263, %s21, 0
      %p265 = scmp.lt.s32.totalorder %s22, 0
      %s266 = scalar_select %p265, %s22, 0
      %s267 = sadd.s32 %s266, %s264
      %s268 = smul.addr %s262, 3
      %s269 = sadd.s32 %s267, %s268
      %s270 = smul.addr %s269, 8
      %s271 = scalar_lea.vmem %s4, %s270
      %v273 = vld [vmem:[%s252] sm:$0xff]
      %v274 = vpack.c.bf16 %v273, %v273
      %v275 = vld [vmem:[%s1] sm:$0xf]
      %v276 = vld [vmem:[%s1 + $0x4] sm:$0xf]
      %v277 = vld [vmem:[%s1 + $0x8] sm:$0xf]
      %v278 = vld [vmem:[%s1 + $0xc] sm:$0xf]
      %v279 = vld [vmem:[%s2] sm:$0x1]
      %v281 = vperm.slane %v279, 0
      %v287 = vunpack.c.l.b16 %v275
      %v288 = vunpack.c.l.b16 %v276
      %v289 = vunpack.c.l.b16 %v277
      %v290 = vunpack.c.l.b16 %v278
      %v291 = vpack.c.b16 %v288, %v287
      %v292 = vpack.c.b16 %v290, %v289
      %vm295 = vcmask 261120
      %v297 = vsel %vm295, %v274, 0
      %299 = vmatpush.bf16.msra.mxu0 0
      %300 = vmatpush.bf16.msra.mxu0 0
      %301 = vmatpush.bf16.msra.mxu0 0
      %302 = vmatpush.bf16.msra.mxu0 0
      %303 = vmatpush.bf16.msra.mxu0 0
      %304 = vmatpush.bf16.msra.mxu0 0
      %305 = vmatpush.bf16.msra.mxu0 %v292
      %306 = vmatpush.bf16.msra.mxu0 %v291
      %307 = vmatmul.bf16.gmra.mxu0 %v297
      %v308 = vpop.f32.mrf.mxu0
      %v309 = vadd.f32 %v281, %v308
      %v310 = vpop.f32.mrf.mxu0
      %311 = vdwg.mxu0
      %vm312 = vcmp.gt.f32.partialorder %v309, 0.0
      %v313 = vmul.f32 %v309, 0.1
      %v314 = vsel %vm312, %v309, %v313
      %v315 = vpack.c.bf16 %v314, %v314
      %v316 = vld [vmem:[%s260] sm:$0xf]
      %v317 = vld [vmem:[%s260 + $0x4] sm:$0xf]
      %v318 = vld [vmem:[%s260 + $0x8] sm:$0xf]
      %v319 = vld [vmem:[%s260 + $0xc] sm:$0xf]
      %v320 = vld [vmem:[%s260 + $0x10] sm:$0xf]
      %v321 = vld [vmem:[%s260 + $0x14] sm:$0xf]
      %v322 = vld [vmem:[%s260 + $0x18] sm:$0xf]
      %v323 = vld [vmem:[%s260 + $0x1c] sm:$0xf]
      %v324 = vld [vmem:[%s260 + $0x20] sm:$0xf]
      %v325 = vld [vmem:[%s260 + $0x24] sm:$0xf]
      %v326 = vld [vmem:[%s260 + $0x28] sm:$0xf]
      %v327 = vld [vmem:[%s260 + $0x2c] sm:$0xf]
      %v328 = vld [vmem:[%s260 + $0x30] sm:$0xf]
      %v329 = vld [vmem:[%s260 + $0x34] sm:$0xf]
      %v330 = vld [vmem:[%s260 + $0x38] sm:$0xf]
      %v331 = vld [vmem:[%s260 + $0x3c] sm:$0xf]
      %v348 = vunpack.c.l.b16 %v316
      %v349 = vunpack.c.l.b16 %v317
      %v350 = vunpack.c.l.b16 %v318
      %v351 = vunpack.c.l.b16 %v319
      %v352 = vunpack.c.l.b16 %v320
      %v353 = vunpack.c.l.b16 %v321
      %v354 = vunpack.c.l.b16 %v322
      %v355 = vunpack.c.l.b16 %v323
      %v356 = vunpack.c.l.b16 %v324
      %v357 = vunpack.c.l.b16 %v325
      %v358 = vunpack.c.l.b16 %v326
      %v359 = vunpack.c.l.b16 %v327
      %v360 = vunpack.c.l.b16 %v328
      %v361 = vunpack.c.l.b16 %v329
      %v362 = vunpack.c.l.b16 %v330
      %v363 = vunpack.c.l.b16 %v331
      %v364 = vpack.c.b16 %v349, %v348
      %v365 = vpack.c.b16 %v351, %v350
      %v366 = vpack.c.b16 %v353, %v352
      %v367 = vpack.c.b16 %v355, %v354
      %v368 = vpack.c.b16 %v357, %v356
      %v369 = vpack.c.b16 %v359, %v358
      %v370 = vpack.c.b16 %v361, %v360
      %v371 = vpack.c.b16 %v363, %v362
      %380 = vmatpush.bf16.msra.mxu0 %v371
      %381 = vmatpush.bf16.msra.mxu0 %v370
      %382 = vmatpush.bf16.msra.mxu0 %v369
      %383 = vmatpush.bf16.msra.mxu0 %v368
      %384 = vmatpush.bf16.msra.mxu0 %v367
      %385 = vmatpush.bf16.msra.mxu0 %v366
      %386 = vmatpush.bf16.msra.mxu0 %v365
      %387 = vmatpush.bf16.msra.mxu0 %v364
      %388 = vmatmul.bf16.gmra.mxu0 %v315
      %v389 = vpop.f32.mrf.mxu0
      %v390 = vadd.f32 0.0, %v389
      %v391 = vpop.f32.mrf.mxu0
      %392 = vdwg.mxu0
      %393 = vst [vmem:[%s271] sm:$0xff] %v390
      %s394 = scalar_lea.vmem %s260, 64
      %v395 = vld [vmem:[%s394] sm:$0xf]
      %v396 = vld [vmem:[%s394 + $0x4] sm:$0xf]
      %v397 = vld [vmem:[%s394 + $0x8] sm:$0xf]
      %v398 = vld [vmem:[%s394 + $0xc] sm:$0xf]
      %v399 = vld [vmem:[%s394 + $0x10] sm:$0xf]
      %v400 = vld [vmem:[%s394 + $0x14] sm:$0xf]
      %v401 = vld [vmem:[%s394 + $0x18] sm:$0xf]
      %v402 = vld [vmem:[%s394 + $0x1c] sm:$0xf]
      %v403 = vld [vmem:[%s394 + $0x20] sm:$0xf]
      %v404 = vld [vmem:[%s394 + $0x24] sm:$0xf]
      %v405 = vld [vmem:[%s394 + $0x28] sm:$0xf]
      %v406 = vld [vmem:[%s394 + $0x2c] sm:$0xf]
      %v407 = vld [vmem:[%s394 + $0x30] sm:$0xf]
      %v408 = vld [vmem:[%s394 + $0x34] sm:$0xf]
      %v409 = vld [vmem:[%s394 + $0x38] sm:$0xf]
      %v410 = vld [vmem:[%s394 + $0x3c] sm:$0xf]
      %v427 = vunpack.c.l.b16 %v395
      %v428 = vunpack.c.l.b16 %v396
      %v429 = vunpack.c.l.b16 %v397
      %v430 = vunpack.c.l.b16 %v398
      %v431 = vunpack.c.l.b16 %v399
      %v432 = vunpack.c.l.b16 %v400
      %v433 = vunpack.c.l.b16 %v401
      %v434 = vunpack.c.l.b16 %v402
      %v435 = vunpack.c.l.b16 %v403
      %v436 = vunpack.c.l.b16 %v404
      %v437 = vunpack.c.l.b16 %v405
      %v438 = vunpack.c.l.b16 %v406
      %v439 = vunpack.c.l.b16 %v407
      %v440 = vunpack.c.l.b16 %v408
      %v441 = vunpack.c.l.b16 %v409
      %v442 = vunpack.c.l.b16 %v410
      %v443 = vpack.c.b16 %v428, %v427
      %v444 = vpack.c.b16 %v430, %v429
      %v445 = vpack.c.b16 %v432, %v431
      %v446 = vpack.c.b16 %v434, %v433
      %v447 = vpack.c.b16 %v436, %v435
      %v448 = vpack.c.b16 %v438, %v437
      %v449 = vpack.c.b16 %v440, %v439
      %v450 = vpack.c.b16 %v442, %v441
      %459 = vmatpush.bf16.msra.mxu0 %v450
      %460 = vmatpush.bf16.msra.mxu0 %v449
      %461 = vmatpush.bf16.msra.mxu0 %v448
      %462 = vmatpush.bf16.msra.mxu0 %v447
      %463 = vmatpush.bf16.msra.mxu0 %v446
      %464 = vmatpush.bf16.msra.mxu0 %v445
      %465 = vmatpush.bf16.msra.mxu0 %v444
      %466 = vmatpush.bf16.msra.mxu0 %v443
      %467 = vmatmul.bf16.gmra.mxu0 %v315
      %v468 = vpop.f32.mrf.mxu0
      %v469 = vadd.f32 0.0, %v468
      %v470 = vpop.f32.mrf.mxu0
      %471 = vdwg.mxu0
      %s472 = scalar_lea.vmem %s271, 8
      %473 = vst [vmem:[%s472] sm:$0xff] %v469
      %s474 = scalar_lea.vmem %s260, 128
      %v475 = vld [vmem:[%s474] sm:$0xf]
      %v476 = vld [vmem:[%s474 + $0x4] sm:$0xf]
      %v477 = vld [vmem:[%s474 + $0x8] sm:$0xf]
      %v478 = vld [vmem:[%s474 + $0xc] sm:$0xf]
      %v479 = vld [vmem:[%s474 + $0x10] sm:$0xf]
      %v480 = vld [vmem:[%s474 + $0x14] sm:$0xf]
      %v481 = vld [vmem:[%s474 + $0x18] sm:$0xf]
      %v482 = vld [vmem:[%s474 + $0x1c] sm:$0xf]
      %v483 = vld [vmem:[%s474 + $0x20] sm:$0xf]
      %v484 = vld [vmem:[%s474 + $0x24] sm:$0xf]
      %v485 = vld [vmem:[%s474 + $0x28] sm:$0xf]
      %v486 = vld [vmem:[%s474 + $0x2c] sm:$0xf]
      %v487 = vld [vmem:[%s474 + $0x30] sm:$0xf]
      %v488 = vld [vmem:[%s474 + $0x34] sm:$0xf]
      %v489 = vld [vmem:[%s474 + $0x38] sm:$0xf]
      %v490 = vld [vmem:[%s474 + $0x3c] sm:$0xf]
      %v507 = vunpack.c.l.b16 %v475
      %v508 = vunpack.c.l.b16 %v476
      %v509 = vunpack.c.l.b16 %v477
      %v510 = vunpack.c.l.b16 %v478
      %v511 = vunpack.c.l.b16 %v479
      %v512 = vunpack.c.l.b16 %v480
      %v513 = vunpack.c.l.b16 %v481
      %v514 = vunpack.c.l.b16 %v482
      %v515 = vunpack.c.l.b16 %v483
      %v516 = vunpack.c.l.b16 %v484
      %v517 = vunpack.c.l.b16 %v485
      %v518 = vunpack.c.l.b16 %v486
      %v519 = vunpack.c.l.b16 %v487
      %v520 = vunpack.c.l.b16 %v488
      %v521 = vunpack.c.l.b16 %v489
      %v522 = vunpack.c.l.b16 %v490
      %v523 = vpack.c.b16 %v508, %v507
      %v524 = vpack.c.b16 %v510, %v509
      %v525 = vpack.c.b16 %v512, %v511
      %v526 = vpack.c.b16 %v514, %v513
      %v527 = vpack.c.b16 %v516, %v515
      %v528 = vpack.c.b16 %v518, %v517
      %v529 = vpack.c.b16 %v520, %v519
      %v530 = vpack.c.b16 %v522, %v521
      %539 = vmatpush.bf16.msra.mxu0 %v530
      %540 = vmatpush.bf16.msra.mxu0 %v529
      %541 = vmatpush.bf16.msra.mxu0 %v528
      %542 = vmatpush.bf16.msra.mxu0 %v527
      %543 = vmatpush.bf16.msra.mxu0 %v526
      %544 = vmatpush.bf16.msra.mxu0 %v525
      %545 = vmatpush.bf16.msra.mxu0 %v524
      %546 = vmatpush.bf16.msra.mxu0 %v523
      %547 = vmatmul.bf16.gmra.mxu0 %v315
      %v548 = vpop.f32.mrf.mxu0
      %v549 = vadd.f32 0.0, %v548
      %v550 = vpop.f32.mrf.mxu0
      %551 = vdwg.mxu0
      %s552 = scalar_lea.vmem %s271, 16
      %553 = vst [vmem:[%s552] sm:$0xff] %v549
      %p554 = scmp.lt.s32.totalorder %s20, 1
      %s555 = scalar_select %p554, %s20, 1
      %p556 = scmp.lt.s32.totalorder %s21, 0
      %s557 = scalar_select %p556, %s21, 0
      %p558 = scmp.lt.s32.totalorder %s22, 0
      %s559 = scalar_select %p558, %s22, 0
      %s560 = sadd.s32 %s559, %s557
      %s561 = smul.addr %s555, 3
      %s562 = sadd.s32 %s560, %s561
      %s563 = smul.addr %s562, 8
      %s564 = scalar_lea.vmem %s4, %s563
      // Predicated region
      $region37: #{span_scorer_forward.3} parent=35 // pred_check
        %p565 = pneg %p154
      $region38: #{span_scorer_forward.3} parent=35 // pred_check_branch
        %567 = sbr.rel (%p565) target = $region40
      $region39: #{span_scorer_forward.3} parent=35 // pred_region
        _
      $region40: #{span_scorer_forward.3} parent=35 // pred_fallthru
        _
    $region36: #{span_scorer_forward.3} parent=5 // pred_fallthru
      _
    %p568 = scmp.le.s32.totalorder 2, %s10
    // Predicated region
    $region41: #{span_scorer_forward.3} parent=5 // pred_check
      %p569 = pneg %p568
    $region42: #{span_scorer_forward.3} parent=5 // pred_check_branch
      %571 = sbr.rel (%p569) target = $region44
    $region43: #{span_scorer_forward.3} parent=5 // pred_region
      %s572 = ssub.s32 %s10, 2
      // Predicated region
      $region45: #{span_scorer_forward.3} parent=43 // pred_check
        %p573 = pneg %p160
      $region46: #{span_scorer_forward.3} parent=43 // pred_check_branch
        %575 = sbr.rel (%p573) target = $region48
      $region47: #{span_scorer_forward.3} parent=43 // pred_region
        %p576 = scmp.lt.s32.totalorder %s23, 1
        %s577 = scalar_select %p576, %s23, 1
        %p578 = scmp.lt.s32.totalorder %s24, 0
        %s579 = scalar_select %p578, %s24, 0
        %p580 = scmp.lt.s32.totalorder %s25, 0
        %s581 = scalar_select %p580, %s25, 0
        %s582 = sadd.s32 %s581, %s579
        %s583 = smul.addr %s577, 3
        %s584 = sadd.s32 %s582, %s583
        %s585 = smul.addr %s584, 8
        %s586 = scalar_lea.vmem %s4, %s585
      $region48: #{span_scorer_forward.3} parent=43 // pred_fallthru
        _
    $region44: #{span_scorer_forward.3} parent=5 // pred_fallthru
      _
  $region6: #{span_scorer_forward.3} parent=0 // loop_footer
    %s14 = sadd.s32 1, %s10
  $region7: #{span_scorer_forward.3} parent=0 // loop_footer_branch
    %9 = sbr.rel target = $region3
  $region8: #{span_scorer_forward.3} parent=0 // loop_exit
    _

// kernel: span_scorer_forward.2
$region0: #{span_scorer_forward.2}
  #allocation0 [shape = 'u32[]', space=smem, size = 0x4, offset = 0x4, fixed_abs, tag = 'smem constant byte address 0x4 - core index']
  #allocation1 [shape = 'u32[72,128]{1,0:T(1,128)}', space=vmem, size = 0x9000, scoped, tag = 'internal scratch']
  %s0 = inlined_call_operand.vmem [shape: f32[2,128,48], index: 0, kind: input, shape index: {}]
  %s1 = inlined_call_operand.vmem [shape: bf16[48,128], index: 1, kind: input, shape index: {}]
  %s2 = inlined_call_operand.vmem [shape: f32[1,128], index: 2, kind: input, shape index: {}]
  %s3 = inlined_call_operand.vmem [shape: bf16[3,128,128], index: 3, kind: input, shape index: {}]
  %s4 = inlined_call_operand.vmem [shape: bf16[2,3,128,128], index: 4, kind: output, shape index: {}]
  %s5 = sld [smem:[#allocation0]]
  $region49: #{span_scorer_forward.2} parent=0
    _
  %s7 = ssub.s32 1, %s5
  %s8 = scalar_select 0, %s7, %s5
  loop: start=0, step=1, limit=4
  $region2: #{span_scorer_forward.2} parent=0 // loop_pre_header
    _
  $region3: #{span_scorer_forward.2} parent=0 // loop_header
    %s10 = sphi 0, %s14
    %p11 = scmp.ge.s32.totalorder %s10, 4
    %s17 = sphi 0, %s29
    %s18 = sphi 0, %s25
    %s19 = sphi 0, %s17
    %s20 = sphi 0, %s18
    %s21 = sphi 0, %s19
    %s22 = sphi 0, %s20
    %s34 = sphi 0, %s36
    %s37 = sphi 0, %s34
    %s38 = sphi 0, %s37
    %s54 = sphi 0, %s38
    %s58 = sphi 0, %s58
    %s60 = sphi 0, %s58
    %s61 = sphi 0, %s60
    %s75 = sphi 0, %s61
    %s79 = sphi 0, %s79
    %s81 = sphi 0, %s79
    %s82 = sphi 0, %s81
    %s96 = sphi 0, %s82
    %s100 = sphi 0, %s100
    %s102 = sphi 0, %s100
    %s103 = sphi 0, %s102
    %s117 = sphi 0, %s103
    %s125 = sphi 0, %s127
    %s128 = sphi 0, %s125
    %s129 = sphi 0, %s128
    %s145 = sphi 0, %s129
  $region4: #{span_scorer_forward.2} parent=0 // loop_header_branch
    %13 = sbr.rel (%p11) target = $region8
  $region5: #{span_scorer_forward.2} parent=0 // loop_body
    %s15 = ssub.s32 %s10, 1
    %s16 = ssub.s32 %s10, 2
    %s23 = sadd.s32 1, %s18
    %p24 = scmp.ge.s32.totalorder %s23, 1
    %s25 = scalar_select %p24, 0, %s23
    %s26 = sadd.s32 1, %s17
    %s27 = scalar_select %p24, %s26, %s17
    %p28 = scmp.ge.s32.totalorder %s27, 2
    %s29 = scalar_select %p28, 0, %s27
    %s30 = ssub.s32 %s17, %s29
    %s31 = ssub.s32 %s18, %s25
    %s32 = sor.u32 %s30, %s31
    %p33 = scmp.eq.s32.totalorder %s32, 0
    %s35 = sadd.s32 %s34, 1
    %s36 = scalar_select %p33, %s34, %s35
    %p39 = pneg %p33
    %p40 = scmp.eq.s32.totalorder %s10, 1
    %p41 = por %p39, %p40
    %p42 = scmp.ne.s32.totalorder %s34, %s37
    %p43 = scmp.eq.s32.totalorder %s10, 0
    %p44 = por %p42, %p43
    %p45 = scmp.ne.s32.totalorder %s34, %s37
    %p46 = scmp.eq.s32.totalorder %s15, 1
    %p47 = por %p45, %p46
    %p48 = scmp.ne.s32.totalorder %s37, %s38
    %p49 = scmp.eq.s32.totalorder %s15, 0
    %p50 = por %p48, %p49
    %p51 = scmp.ne.s32.totalorder %s37, %s38
    %p52 = scmp.eq.s32.totalorder %s16, 1
    %p53 = por %p51, %p52
    %p55 = scmp.ne.s32.totalorder %s38, %s54
    %p56 = scmp.eq.s32.totalorder %s16, 0
    %p57 = por %p55, %p56
    %s59 = sadd.s32 %s58, 1
    %p62 = scmp.eq.s32.totalorder %s10, 1
    %p63 = scmp.ne.s32.totalorder %s58, %s60
    %p64 = scmp.eq.s32.totalorder %s10, 0
    %p65 = por %p63, %p64
    %p66 = scmp.ne.s32.totalorder %s58, %s60
    %p67 = scmp.eq.s32.totalorder %s15, 1
    %p68 = por %p66, %p67
    %p69 = scmp.ne.s32.totalorder %s60, %s61
    %p70 = scmp.eq.s32.totalorder %s15, 0
    %p71 = por %p69, %p70
    %p72 = scmp.ne.s32.totalorder %s60, %s61
    %p73 = scmp.eq.s32.totalorder %s16, 1
    %p74 = por %p72, %p73
    %p76 = scmp.ne.s32.totalorder %s61, %s75
    %p77 = scmp.eq.s32.totalorder %s16, 0
    %p78 = por %p76, %p77
    %s80 = sadd.s32 %s79, 1
    %p83 = scmp.eq.s32.totalorder %s10, 1
    %p84 = scmp.ne.s32.totalorder %s79, %s81
    %p85 = scmp.eq.s32.totalorder %s10, 0
    %p86 = por %p84, %p85
    %p87 = scmp.ne.s32.totalorder %s79, %s81
    %p88 = scmp.eq.s32.totalorder %s15, 1
    %p89 = por %p87, %p88
    %p90 = scmp.ne.s32.totalorder %s81, %s82
    %p91 = scmp.eq.s32.totalorder %s15, 0
    %p92 = por %p90, %p91
    %p93 = scmp.ne.s32.totalorder %s81, %s82
    %p94 = scmp.eq.s32.totalorder %s16, 1
    %p95 = por %p93, %p94
    %p97 = scmp.ne.s32.totalorder %s82, %s96
    %p98 = scmp.eq.s32.totalorder %s16, 0
    %p99 = por %p97, %p98
    %s101 = sadd.s32 %s100, 1
    %p104 = scmp.eq.s32.totalorder %s10, 1
    %p105 = scmp.ne.s32.totalorder %s100, %s102
    %p106 = scmp.eq.s32.totalorder %s10, 0
    %p107 = por %p105, %p106
    %p108 = scmp.ne.s32.totalorder %s100, %s102
    %p109 = scmp.eq.s32.totalorder %s15, 1
    %p110 = por %p108, %p109
    %p111 = scmp.ne.s32.totalorder %s102, %s103
    %p112 = scmp.eq.s32.totalorder %s15, 0
    %p113 = por %p111, %p112
    %p114 = scmp.ne.s32.totalorder %s102, %s103
    %p115 = scmp.eq.s32.totalorder %s16, 1
    %p116 = por %p114, %p115
    %p118 = scmp.ne.s32.totalorder %s103, %s117
    %p119 = scmp.eq.s32.totalorder %s16, 0
    %p120 = por %p118, %p119
    %s121 = ssub.s32 %s17, %s29
    %s122 = ssub.s32 %s18, %s25
    %s123 = sor.u32 %s121, %s122
    %p124 = scmp.eq.s32.totalorder %s123, 0
    %s126 = sadd.s32 %s125, 1
    %s127 = scalar_select %p124, %s125, %s126
    %p130 = pneg %p124
    %p131 = scmp.eq.s32.totalorder %s10, 1
    %p132 = por %p130, %p131
    %p133 = scmp.ne.s32.totalorder %s125, %s128
    %p134 = scmp.eq.s32.totalorder %s10, 0
    %p135 = por %p133, %p134
    %p136 = scmp.ne.s32.totalorder %s125, %s128
    %p137 = scmp.eq.s32.totalorder %s15, 1
    %p138 = por %p136, %p137
    %p139 = scmp.ne.s32.totalorder %s128, %s129
    %p140 = scmp.eq.s32.totalorder %s15, 0
    %p141 = por %p139, %p140
    %p142 = scmp.ne.s32.totalorder %s128, %s129
    %p143 = scmp.eq.s32.totalorder %s16, 1
    %p144 = por %p142, %p143
    %p146 = scmp.ne.s32.totalorder %s129, %s145
    %p147 = scmp.eq.s32.totalorder %s16, 0
    %p148 = por %p146, %p147
    %p149 = scmp.le.s32.totalorder 1, %s10
    %p150 = scmp.lt.s32.totalorder %s10, 3
    %p151 = pnand %p149, %p150
    %p152 = pneg %p151
    // Predicated region
    $region9: #{span_scorer_forward.2} parent=5 // pred_check
      _
    $region10: #{span_scorer_forward.2} parent=5 // pred_check_branch
      %154 = sbr.rel (%p151) target = $region12
    $region11: #{span_scorer_forward.2} parent=5 // pred_region
      %s155 = ssub.s32 %s10, 1
      // Predicated region
      $region13: #{span_scorer_forward.2} parent=11 // pred_check
        %p156 = pneg %p71
      $region14: #{span_scorer_forward.2} parent=11 // pred_check_branch
        %158 = sbr.rel (%p156) target = $region16
      $region15: #{span_scorer_forward.2} parent=11 // pred_region
        _
      $region16: #{span_scorer_forward.2} parent=11 // pred_fallthru
        _
      // Predicated region
      $region17: #{span_scorer_forward.2} parent=11 // pred_check
        %p159 = pneg %p92
      $region18: #{span_scorer_forward.2} parent=11 // pred_check_branch
        %161 = sbr.rel (%p159) target = $region20
      $region19: #{span_scorer_forward.2} parent=11 // pred_region
        _
      $region20: #{span_scorer_forward.2} parent=11 // pred_fallthru
        _
      // Predicated region
      $region21: #{span_scorer_forward.2} parent=11 // pred_check
        %p162 = pneg %p113
      $region22: #{span_scorer_forward.2} parent=11 // pred_check_branch
        %164 = sbr.rel (%p162) target = $region24
      $region23: #{span_scorer_forward.2} parent=11 // pred_region
        _
      $region24: #{span_scorer_forward.2} parent=11 // pred_fallthru
        _
    $region12: #{span_scorer_forward.2} parent=5 // pred_fallthru
      _
    %p165 = scmp.lt.s32.totalorder %s10, 2
    // Predicated region
    $region25: #{span_scorer_forward.2} parent=5 // pred_check
      %p166 = pneg %p165
    $region26: #{span_scorer_forward.2} parent=5 // pred_check_branch
      %168 = sbr.rel (%p166) target = $region28
    $region27: #{span_scorer_forward.2} parent=5 // pred_region
      // Predicated region
      $region29: #{span_scorer_forward.2} parent=27 // pred_check
        %p169 = pneg %p44
      $region30: #{span_scorer_forward.2} parent=27 // pred_check_branch
        %171 = sbr.rel (%p169) target = $region32
      $region31: #{span_scorer_forward.2} parent=27 // pred_region
        %s172 = smul.u32 16, %s18
        %p173 = scmp.lt.s32.totalorder %s17, 1
        %s174 = scalar_select %p173, %s17, 1
        %p175 = scmp.lt.s32.totalorder %s172, 15
        %s176 = scalar_select %p175, %s172, 15
        %s177 = smul.addr %s174, 16
        %s178 = sadd.s32 %s176, %s177
        %s179 = smul.addr %s178, 8
        %s180 = scalar_lea.vmem %s0, %s179
        %s181 = smul.u32 16, %s18
      $region32: #{span_scorer_forward.2} parent=27 // pred_fallthru
        _
    $region28: #{span_scorer_forward.2} parent=5 // pred_fallthru
      _
    %p182 = scmp.le.s32.totalorder 1, %s10
    %p183 = scmp.lt.s32.totalorder %s10, 3
    %p184 = pnand %p182, %p183
    %p185 = pneg %p184
    // Predicated region
    $region33: #{span_scorer_forward.2} parent=5 // pred_check
      _
    $region34: #{span_scorer_forward.2} parent=5 // pred_check_branch
      %187 = sbr.rel (%p184) target = $region36
    $region35: #{span_scorer_forward.2} parent=5 // pred_region
      %s188 = ssub.s32 %s10, 1
      %s189 = smul.u32 16, %s20
      %p190 = scmp.lt.s32.totalorder %s19, 1
      %s191 = scalar_select %p190, %s19, 1
      %p192 = scmp.lt.s32.totalorder %s189, 15
      %s193 = scalar_select %p192, %s189, 15
      %s194 = smul.addr %s191, 16
      %s195 = sadd.s32 %s193, %s194
      %s196 = smul.addr %s195, 8
      %s197 = scalar_lea.vmem %s0, %s196
      %p198 = pneg %p50
      %p199 = pneg %p47
      %p200 = pneg %p71
      %p201 = pneg %p68
      %p202 = pneg %p92
      %p203 = pneg %p89
      %p204 = pneg %p113
      %p205 = pneg %p110
      %p206 = pneg %p141
      %p207 = pneg %p138
      %p208 = scmp.lt.s32.totalorder %s19, 1
      %s209 = scalar_select %p208, %s19, 1
      %p210 = scmp.lt.s32.totalorder %s20, 0
      %s211 = scalar_select %p210, %s20, 0
      %s212 = smul.addr %s209, 48
      %s213 = sadd.s32 %s211, %s212
      %s214 = smul.addr %s213, 4
      %s215 = scalar_lea.vmem %s4, %s214
      %s216 = smul.u32 16, %s20
      %p217 = scmp.lt.s32.totalorder %s19, 1
      %s218 = scalar_select %p217, %s19, 1
      %p219 = scmp.lt.s32.totalorder %s216, 15
      %s220 = scalar_select %p219, %s216, 15
      %s221 = smul.addr %s218, 16
      %s222 = sadd.s32 %s220, %s221
      %s223 = smul.addr %s222, 8
      %s224 = scalar_lea.vmem %s0, %s223
      %s225 = smul.u32 16, %s20
      %p226 = scmp.lt.s32.totalorder %s19, 1
      %s227 = scalar_select %p226, %s19, 1
      %p228 = scmp.lt.s32.totalorder %s20, 0
      %s229 = scalar_select %p228, %s20, 0
      %s230 = smul.addr %s227, 48
      %s231 = sadd.s32 %s229, %s230
      %s232 = smul.addr %s231, 4
      %s233 = scalar_lea.vmem %s4, %s232
      %v235 = vld [vmem:[%s224] sm:$0xff]
      %v236 = vld [vmem:[%s224 + $0x8] sm:$0xff]
      %v237 = vld [vmem:[%s224 + $0x10] sm:$0xff]
      %v238 = vld [vmem:[%s224 + $0x18] sm:$0xff]
      %v239 = vld [vmem:[%s224 + $0x20] sm:$0xff]
      %v240 = vld [vmem:[%s224 + $0x28] sm:$0xff]
      %v241 = vld [vmem:[%s224 + $0x30] sm:$0xff]
      %v242 = vld [vmem:[%s224 + $0x38] sm:$0xff]
      %v243 = vld [vmem:[%s224 + $0x40] sm:$0xff]
      %v244 = vld [vmem:[%s224 + $0x48] sm:$0xff]
      %v245 = vld [vmem:[%s224 + $0x50] sm:$0xff]
      %v246 = vld [vmem:[%s224 + $0x58] sm:$0xff]
      %v247 = vld [vmem:[%s224 + $0x60] sm:$0xff]
      %v248 = vld [vmem:[%s224 + $0x68] sm:$0xff]
      %v249 = vld [vmem:[%s224 + $0x70] sm:$0xff]
      %v250 = vld [vmem:[%s224 + $0x78] sm:$0xff]
      %v251 = vpack.c.bf16 %v236, %v235
      %v252 = vpack.c.bf16 %v238, %v237
      %v253 = vpack.c.bf16 %v240, %v239
      %v254 = vpack.c.bf16 %v242, %v241
      %v255 = vpack.c.bf16 %v244, %v243
      %v256 = vpack.c.bf16 %v246, %v245
      %v257 = vpack.c.bf16 %v248, %v247
      %v258 = vpack.c.bf16 %v250, %v249
      %v259 = vld [vmem:[%s1] sm:$0xf]
      %v260 = vld [vmem:[%s1 + $0x4] sm:$0xf]
      %v261 = vld [vmem:[%s1 + $0x8] sm:$0xf]
      %v262 = vld [vmem:[%s1 + $0xc] sm:$0xf]
      %v263 = vld [vmem:[%s1 + $0x10] sm:$0xf]
      %v264 = vld [vmem:[%s1 + $0x14] sm:$0xf]
      %v265 = vld [vmem:[%s2] sm:$0x1]
      %v267 = vperm.slane %v265, 0
      %v275 = vunpack.c.l.b16 %v259
      %v276 = vunpack.c.l.b16 %v260
      %v277 = vunpack.c.l.b16 %v261
      %v278 = vunpack.c.l.b16 %v262
      %v279 = vunpack.c.l.b16 %v263
      %v280 = vunpack.c.l.b16 %v264
      %v281 = vpack.c.b16 %v276, %v275
      %v282 = vpack.c.b16 %v278, %v277
      %v283 = vpack.c.b16 %v280, %v279
      %vm287 = vcmask 392192
      %v289 = vsel %vm287, %v251, 0
      %v292 = vsel %vm287, %v252, 0
      %v295 = vsel %vm287, %v253, 0
      %v298 = vsel %vm287, %v254, 0
      %v301 = vsel %vm287, %v255, 0
      %v304 = vsel %vm287, %v256, 0
      %v307 = vsel %vm287, %v257, 0
      %v310 = vsel %vm287, %v258, 0
      %312 = vmatpush.bf16.msra.mxu0 0
      %313 = vmatpush.bf16.msra.mxu0 0
      %314 = vmatpush.bf16.msra.mxu0 0
      %315 = vmatpush.bf16.msra.mxu0 0
      %316 = vmatpush.bf16.msra.mxu0 0
      %317 = vmatpush.bf16.msra.mxu0 %v283
      %318 = vmatpush.bf16.msra.mxu0 %v282
      %319 = vmatpush.bf16.msra.mxu0 %v281
      %320 = vmatmul.bf16.gmra.mxu0 %v289
      %v321 = vpop.f32.mrf.mxu0
      %v322 = vadd.f32 %v267, %v321
      %v323 = vpop.f32.mrf.mxu0
      %v324 = vadd.f32 %v267, %v323
      %325 = vmatmul.bf16.gmra.mxu0 %v292
      %v326 = vpop.f32.mrf.mxu0
      %v327 = vadd.f32 %v267, %v326
      %v328 = vpop.f32.mrf.mxu0
      %v329 = vadd.f32 %v267, %v328
      %330 = vmatmul.bf16.gmra.mxu0 %v295
      %v331 = vpop.f32.mrf.mxu0
      %v332 = vadd.f32 %v267, %v331
      %v333 = vpop.f32.mrf.mxu0
      %v334 = vadd.f32 %v267, %v333
      %335 = vmatmul.bf16.gmra.mxu0 %v298
      %v336 = vpop.f32.mrf.mxu0
      %v337 = vadd.f32 %v267, %v336
      %v338 = vpop.f32.mrf.mxu0
      %v339 = vadd.f32 %v267, %v338
      %340 = vmatmul.bf16.gmra.mxu0 %v301
      %v341 = vpop.f32.mrf.mxu0
      %v342 = vadd.f32 %v267, %v341
      %v343 = vpop.f32.mrf.mxu0
      %v344 = vadd.f32 %v267, %v343
      %345 = vmatmul.bf16.gmra.mxu0 %v304
      %v346 = vpop.f32.mrf.mxu0
      %v347 = vadd.f32 %v267, %v346
      %v348 = vpop.f32.mrf.mxu0
      %v349 = vadd.f32 %v267, %v348
      %350 = vmatmul.bf16.gmra.mxu0 %v307
      %v351 = vpop.f32.mrf.mxu0
      %v352 = vadd.f32 %v267, %v351
      %v353 = vpop.f32.mrf.mxu0
      %v354 = vadd.f32 %v267, %v353
      %355 = vmatmul.bf16.gmra.mxu0 %v310
      %v356 = vpop.f32.mrf.mxu0
      %v357 = vadd.f32 %v267, %v356
      %v358 = vpop.f32.mrf.mxu0
      %v359 = vadd.f32 %v267, %v358
      %360 = vdwg.mxu0
      %vm361 = vcmp.gt.f32.partialorder %v322, 0.0
      %vm362 = vcmp.gt.f32.partialorder %v324, 0.0
      %vm363 = vcmp.gt.f32.partialorder %v327, 0.0
      %vm364 = vcmp.gt.f32.partialorder %v329, 0.0
      %vm365 = vcmp.gt.f32.partialorder %v332, 0.0
      %vm366 = vcmp.gt.f32.partialorder %v334, 0.0
      %vm367 = vcmp.gt.f32.partialorder %v337, 0.0
      %vm368 = vcmp.gt.f32.partialorder %v339, 0.0
      %vm369 = vcmp.gt.f32.partialorder %v342, 0.0
      %vm370 = vcmp.gt.f32.partialorder %v344, 0.0
      %vm371 = vcmp.gt.f32.partialorder %v347, 0.0
      %vm372 = vcmp.gt.f32.partialorder %v349, 0.0
      %vm373 = vcmp.gt.f32.partialorder %v352, 0.0
      %vm374 = vcmp.gt.f32.partialorder %v354, 0.0
      %vm375 = vcmp.gt.f32.partialorder %v357, 0.0
      %vm376 = vcmp.gt.f32.partialorder %v359, 0.0
      %v377 = vmul.f32 %v322, 0.1
      %v378 = vmul.f32 %v324, 0.1
      %v379 = vmul.f32 %v327, 0.1
      %v380 = vmul.f32 %v329, 0.1
      %v381 = vmul.f32 %v332, 0.1
      %v382 = vmul.f32 %v334, 0.1
      %v383 = vmul.f32 %v337, 0.1
      %v384 = vmul.f32 %v339, 0.1
      %v385 = vmul.f32 %v342, 0.1
      %v386 = vmul.f32 %v344, 0.1
      %v387 = vmul.f32 %v347, 0.1
      %v388 = vmul.f32 %v349, 0.1
      %v389 = vmul.f32 %v352, 0.1
      %v390 = vmul.f32 %v354, 0.1
      %v391 = vmul.f32 %v357, 0.1
      %v392 = vmul.f32 %v359, 0.1
      %v393 = vsel %vm361, %v322, %v377
      %v394 = vsel %vm362, %v324, %v378
      %v395 = vsel %vm363, %v327, %v379
      %v396 = vsel %vm364, %v329, %v380
      %v397 = vsel %vm365, %v332, %v381
      %v398 = vsel %vm366, %v334, %v382
      %v399 = vsel %vm367, %v337, %v383
      %v400 = vsel %vm368, %v339, %v384
      %v401 = vsel %vm369, %v342, %v385
      %v402 = vsel %vm370, %v344, %v386
      %v403 = vsel %vm371, %v347, %v387
      %v404 = vsel %vm372, %v349, %v388
      %v405 = vsel %vm373, %v352, %v389
      %v406 = vsel %vm374, %v354, %v390
      %v407 = vsel %vm375, %v357, %v391
      %v408 = vsel %vm376, %v359, %v392
      %409 = vxpose.xlu0.b32.start [1/16] %v393, 128
      %410 = vxpose.xlu0.b32.cont [2/16] %v394, 128
      %411 = vxpose.xlu0.b32.cont [3/16] %v395, 128
      %412 = vxpose.xlu0.b32.cont [4/16] %v396, 128
      %413 = vxpose.xlu0.b32.cont [5/16] %v397, 128
      %414 = vxpose.xlu0.b32.cont [6/16] %v398, 128
      %415 = vxpose.xlu0.b32.cont [7/16] %v399, 128
      %416 = vxpose.xlu0.b32.cont [8/16] %v400, 128
      %417 = vxpose.xlu0.b32.cont [9/16] %v401, 128
      %418 = vxpose.xlu0.b32.cont [10/16] %v402, 128
      %419 = vxpose.xlu0.b32.cont [11/16] %v403, 128
      %420 = vxpose.xlu0.b32.cont [12/16] %v404, 128
      %421 = vxpose.xlu0.b32.cont [13/16] %v405, 128
      %422 = vxpose.xlu0.b32.cont [14/16] %v406, 128
      %423 = vxpose.xlu0.b32.cont [15/16] %v407, 128
      %424 = vxpose.xlu0.b32.end [16/16] %v408, 128
      %v425 = vpop.trf.xlu0
      %v426 = vpop.trf.xlu0
      %v427 = vpop.trf.xlu0
      %v428 = vpop.trf.xlu0
      %v429 = vpop.trf.xlu0
      %v430 = vpop.trf.xlu0
      %v431 = vpop.trf.xlu0
      %v432 = vpop.trf.xlu0
      %v433 = vpop.trf.xlu0
      %v434 = vpop.trf.xlu0
      %v435 = vpop.trf.xlu0
      %v436 = vpop.trf.xlu0
      %v437 = vpop.trf.xlu0
      %v438 = vpop.trf.xlu0
      %v439 = vpop.trf.xlu0
      %v440 = vpop.trf.xlu0
      %v441 = vpack.c.bf16 %v426, %v425
      %v442 = vpack.c.bf16 %v428, %v427
      %v443 = vpack.c.bf16 %v430, %v429
      %v444 = vpack.c.bf16 %v432, %v431
      %v445 = vpack.c.bf16 %v434, %v433
      %v446 = vpack.c.bf16 %v436, %v435
      %v447 = vpack.c.bf16 %v438, %v437
      %v448 = vpack.c.bf16 %v440, %v439
      %v449 = vld [vmem:[%s3] sm:$0xf]
      %v450 = vld [vmem:[%s3 + $0x4] sm:$0xf]
      %v451 = vld [vmem:[%s3 + $0x8] sm:$0xf]
      %v452 = vld [vmem:[%s3 + $0xc] sm:$0xf]
      %v453 = vld [vmem:[%s3 + $0x10] sm:$0xf]
      %v454 = vld [vmem:[%s3 + $0x14] sm:$0xf]
      %v455 = vld [vmem:[%s3 + $0x18] sm:$0xf]
      %v456 = vld [vmem:[%s3 + $0x1c] sm:$0xf]
      %v457 = vld [vmem:[%s3 + $0x20] sm:$0xf]
      %v458 = vld [vmem:[%s3 + $0x24] sm:$0xf]
      %v459 = vld [vmem:[%s3 + $0x28] sm:$0xf]
      %v460 = vld [vmem:[%s3 + $0x2c] sm:$0xf]
      %v461 = vld [vmem:[%s3 + $0x30] sm:$0xf]
      %v462 = vld [vmem:[%s3 + $0x34] sm:$0xf]
      %v463 = vld [vmem:[%s3 + $0x38] sm:$0xf]
      %v464 = vld [vmem:[%s3 + $0x3c] sm:$0xf]
      %v481 = vunpack.c.l.b16 %v449
      %v482 = vunpack.c.l.b16 %v450
      %v483 = vunpack.c.l.b16 %v451
      %v484 = vunpack.c.l.b16 %v452
      %v485 = vunpack.c.l.b16 %v453
      %v486 = vunpack.c.l.b16 %v454
      %v487 = vunpack.c.l.b16 %v455
      %v488 = vunpack.c.l.b16 %v456
      %v489 = vunpack.c.l.b16 %v457
      %v490 = vunpack.c.l.b16 %v458
      %v491 = vunpack.c.l.b16 %v459
      %v492 = vunpack.c.l.b16 %v460
      %v493 = vunpack.c.l.b16 %v461
      %v494 = vunpack.c.l.b16 %v462
      %v495 = vunpack.c.l.b16 %v463
      %v496 = vunpack.c.l.b16 %v464
      %v497 = vpack.c.b16 %v482, %v481
      %v498 = vpack.c.b16 %v484, %v483
      %v499 = vpack.c.b16 %v486, %v485
      %v500 = vpack.c.b16 %v488, %v487
      %v501 = vpack.c.b16 %v490, %v489
      %v502 = vpack.c.b16 %v492, %v491
      %v503 = vpack.c.b16 %v494, %v493
      %v504 = vpack.c.b16 %v496, %v495
      %513 = vmatpush.bf16.msra.mxu0 %v448
      %514 = vmatpush.bf16.msra.mxu0 %v447
      %515 = vmatpush.bf16.msra.mxu0 %v446
      %516 = vmatpush.bf16.msra.mxu0 %v445
      %517 = vmatpush.bf16.msra.mxu0 %v444
      %518 = vmatpush.bf16.msra.mxu0 %v443
      %519 = vmatpush.bf16.msra.mxu0 %v442
      %520 = vmatpush.bf16.msra.mxu0 %v441
      %521 = vmatmul.bf16.gmra.mxu0 %v497
      %v522 = vpop.f32.mrf.mxu0
      %v523 = vadd.f32 0.0, %v522
      %v524 = vpop.f32.mrf.mxu0
      %v525 = vadd.f32 0.0, %v524
      %526 = vmatmul.bf16.gmra.mxu0 %v498
      %v527 = vpop.f32.mrf.mxu0
      %v528 = vadd.f32 0.0, %v527
      %v529 = vpop.f32.mrf.mxu0
      %v530 = vadd.f32 0.0, %v529
      %531 = vmatmul.bf16.gmra.mxu0 %v499
      %v532 = vpop.f32.mrf.mxu0
      %v533 = vadd.f32 0.0, %v532
      %v534 = vpop.f32.mrf.mxu0
      %v535 = vadd.f32 0.0, %v534
      %536 = vmatmul.bf16.gmra.mxu0 %v500
      %v537 = vpop.f32.mrf.mxu0
      %v538 = vadd.f32 0.0, %v537
      %v539 = vpop.f32.mrf.mxu0
      %v540 = vadd.f32 0.0, %v539
      %541 = vmatmul.bf16.gmra.mxu0 %v501
      %v542 = vpop.f32.mrf.mxu0
      %v543 = vadd.f32 0.0, %v542
      %v544 = vpop.f32.mrf.mxu0
      %v545 = vadd.f32 0.0, %v544
      %546 = vmatmul.bf16.gmra.mxu0 %v502
      %v547 = vpop.f32.mrf.mxu0
      %v548 = vadd.f32 0.0, %v547
      %v549 = vpop.f32.mrf.mxu0
      %v550 = vadd.f32 0.0, %v549
      %551 = vmatmul.bf16.gmra.mxu0 %v503
      %v552 = vpop.f32.mrf.mxu0
      %v553 = vadd.f32 0.0, %v552
      %v554 = vpop.f32.mrf.mxu0
      %v555 = vadd.f32 0.0, %v554
      %556 = vmatmul.bf16.gmra.mxu0 %v504
      %v557 = vpop.f32.mrf.mxu0
      %v558 = vadd.f32 0.0, %v557
      %v559 = vpop.f32.mrf.mxu0
      %v560 = vadd.f32 0.0, %v559
      %561 = vdwg.mxu0
      %v562 = vpack.c.bf16 %v523, %v523
      %v563 = vpack.c.bf16 %v525, %v525
      %v564 = vpack.c.bf16 %v528, %v528
      %v565 = vpack.c.bf16 %v530, %v530
      %v566 = vpack.c.bf16 %v533, %v533
      %v567 = vpack.c.bf16 %v535, %v535
      %v568 = vpack.c.bf16 %v538, %v538
      %v569 = vpack.c.bf16 %v540, %v540
      %v570 = vpack.c.bf16 %v543, %v543
      %v571 = vpack.c.bf16 %v545, %v545
      %v572 = vpack.c.bf16 %v548, %v548
      %v573 = vpack.c.bf16 %v550, %v550
      %v574 = vpack.c.bf16 %v553, %v553
      %v575 = vpack.c.bf16 %v555, %v555
      %v576 = vpack.c.bf16 %v558, %v558
      %v577 = vpack.c.bf16 %v560, %v560
      %578 = vst [vmem:[%s233] sm:$0xf] %v562
      %579 = vst [vmem:[%s233 + $0x4] sm:$0xf] %v563
      %580 = vst [vmem:[%s233 + $0x8] sm:$0xf] %v564
      %581 = vst [vmem:[%s233 + $0xc] sm:$0xf] %v565
      %582 = vst [vmem:[%s233 + $0x10] sm:$0xf] %v566
      %583 = vst [vmem:[%s233 + $0x14] sm:$0xf] %v567
      %584 = vst [vmem:[%s233 + $0x18] sm:$0xf] %v568
      %585 = vst [vmem:[%s233 + $0x1c] sm:$0xf] %v569
      %586 = vst [vmem:[%s233 + $0x20] sm:$0xf] %v570
      %587 = vst [vmem:[%s233 + $0x24] sm:$0xf] %v571
      %588 = vst [vmem:[%s233 + $0x28] sm:$0xf] %v572
      %589 = vst [vmem:[%s233 + $0x2c] sm:$0xf] %v573
      %590 = vst [vmem:[%s233 + $0x30] sm:$0xf] %v574
      %591 = vst [vmem:[%s233 + $0x34] sm:$0xf] %v575
      %592 = vst [vmem:[%s233 + $0x38] sm:$0xf] %v576
      %593 = vst [vmem:[%s233 + $0x3c] sm:$0xf] %v577
      %s594 = scalar_lea.vmem %s3, 64
      %v595 = vld [vmem:[%s594] sm:$0xf]
      %v596 = vld [vmem:[%s594 + $0x4] sm:$0xf]
      %v597 = vld [vmem:[%s594 + $0x8] sm:$0xf]
      %v598 = vld [vmem:[%s594 + $0xc] sm:$0xf]
      %v599 = vld [vmem:[%s594 + $0x10] sm:$0xf]
      %v600 = vld [vmem:[%s594 + $0x14] sm:$0xf]
      %v601 = vld [vmem:[%s594 + $0x18] sm:$0xf]
      %v602 = vld [vmem:[%s594 + $0x1c] sm:$0xf]
      %v603 = vld [vmem:[%s594 + $0x20] sm:$0xf]
      %v604 = vld [vmem:[%s594 + $0x24] sm:$0xf]
      %v605 = vld [vmem:[%s594 + $0x28] sm:$0xf]
      %v606 = vld [vmem:[%s594 + $0x2c] sm:$0xf]
      %v607 = vld [vmem:[%s594 + $0x30] sm:$0xf]
      %v608 = vld [vmem:[%s594 + $0x34] sm:$0xf]
      %v609 = vld [vmem:[%s594 + $0x38] sm:$0xf]
      %v610 = vld [vmem:[%s594 + $0x3c] sm:$0xf]
      %v627 = vunpack.c.l.b16 %v595
      %v628 = vunpack.c.l.b16 %v596
      %v629 = vunpack.c.l.b16 %v597
      %v630 = vunpack.c.l.b16 %v598
      %v631 = vunpack.c.l.b16 %v599
      %v632 = vunpack.c.l.b16 %v600
      %v633 = vunpack.c.l.b16 %v601
      %v634 = vunpack.c.l.b16 %v602
      %v635 = vunpack.c.l.b16 %v603
      %v636 = vunpack.c.l.b16 %v604
      %v637 = vunpack.c.l.b16 %v605
      %v638 = vunpack.c.l.b16 %v606
      %v639 = vunpack.c.l.b16 %v607
      %v640 = vunpack.c.l.b16 %v608
      %v641 = vunpack.c.l.b16 %v609
      %v642 = vunpack.c.l.b16 %v610
      %v643 = vpack.c.b16 %v628, %v627
      %v644 = vpack.c.b16 %v630, %v629
      %v645 = vpack.c.b16 %v632, %v631
      %v646 = vpack.c.b16 %v634, %v633
      %v647 = vpack.c.b16 %v636, %v635
      %v648 = vpack.c.b16 %v638, %v637
      %v649 = vpack.c.b16 %v640, %v639
      %v650 = vpack.c.b16 %v642, %v641
      %659 = vmatpush.bf16.msra.mxu0 %v448
      %660 = vmatpush.bf16.msra.mxu0 %v447
      %661 = vmatpush.bf16.msra.mxu0 %v446
      %662 = vmatpush.bf16.msra.mxu0 %v445
      %663 = vmatpush.bf16.msra.mxu0 %v444
      %664 = vmatpush.bf16.msra.mxu0 %v443
      %665 = vmatpush.bf16.msra.mxu0 %v442
      %666 = vmatpush.bf16.msra.mxu0 %v441
      %667 = vmatmul.bf16.gmra.mxu0 %v643
      %v668 = vpop.f32.mrf.mxu0
      %v669 = vadd.f32 0.0, %v668
      %v670 = vpop.f32.mrf.mxu0
      %v671 = vadd.f32 0.0, %v670
      %672 = vmatmul.bf16.gmra.mxu0 %v644
      %v673 = vpop.f32.mrf.mxu0
      %v674 = vadd.f32 0.0, %v673
      %v675 = vpop.f32.mrf.mxu0
      %v676 = vadd.f32 0.0, %v675
      %677 = vmatmul.bf16.gmra.mxu0 %v645
      %v678 = vpop.f32.mrf.mxu0
      %v679 = vadd.f32 0.0, %v678
      %v680 = vpop.f32.mrf.mxu0
      %v681 = vadd.f32 0.0, %v680
      %682 = vmatmul.bf16.gmra.mxu0 %v646
      %v683 = vpop.f32.mrf.mxu0
      %v684 = vadd.f32 0.0, %v683
      %v685 = vpop.f32.mrf.mxu0
      %v686 = vadd.f32 0.0, %v685
      %687 = vmatmul.bf16.gmra.mxu0 %v647
      %v688 = vpop.f32.mrf.mxu0
      %v689 = vadd.f32 0.0, %v688
      %v690 = vpop.f32.mrf.mxu0
      %v691 = vadd.f32 0.0, %v690
      %692 = vmatmul.bf16.gmra.mxu0 %v648
      %v693 = vpop.f32.mrf.mxu0
      %v694 = vadd.f32 0.0, %v693
      %v695 = vpop.f32.mrf.mxu0
      %v696 = vadd.f32 0.0, %v695
      %697 = vmatmul.bf16.gmra.mxu0 %v649
      %v698 = vpop.f32.mrf.mxu0
      %v699 = vadd.f32 0.0, %v698
      %v700 = vpop.f32.mrf.mxu0
      %v701 = vadd.f32 0.0, %v700
      %702 = vmatmul.bf16.gmra.mxu0 %v650
      %v703 = vpop.f32.mrf.mxu0
      %v704 = vadd.f32 0.0, %v703
      %v705 = vpop.f32.mrf.mxu0
      %v706 = vadd.f32 0.0, %v705
      %707 = vdwg.mxu0
      %v708 = vpack.c.bf16 %v669, %v669
      %v709 = vpack.c.bf16 %v671, %v671
      %v710 = vpack.c.bf16 %v674, %v674
      %v711 = vpack.c.bf16 %v676, %v676
      %v712 = vpack.c.bf16 %v679, %v679
      %v713 = vpack.c.bf16 %v681, %v681
      %v714 = vpack.c.bf16 %v684, %v684
      %v715 = vpack.c.bf16 %v686, %v686
      %v716 = vpack.c.bf16 %v689, %v689
      %v717 = vpack.c.bf16 %v691, %v691
      %v718 = vpack.c.bf16 %v694, %v694
      %v719 = vpack.c.bf16 %v696, %v696
      %v720 = vpack.c.bf16 %v699, %v699
      %v721 = vpack.c.bf16 %v701, %v701
      %v722 = vpack.c.bf16 %v704, %v704
      %v723 = vpack.c.bf16 %v706, %v706
      %s724 = scalar_lea.vmem %s233, 64
      %725 = vst [vmem:[%s724] sm:$0xf] %v708
      %726 = vst [vmem:[%s724 + $0x4] sm:$0xf] %v709
      %727 = vst [vmem:[%s724 + $0x8] sm:$0xf] %v710
      %728 = vst [vmem:[%s724 + $0xc] sm:$0xf] %v711
      %729 = vst [vmem:[%s724 + $0x10] sm:$0xf] %v712
      %730 = vst [vmem:[%s724 + $0x14] sm:$0xf] %v713
      %731 = vst [vmem:[%s724 + $0x18] sm:$0xf] %v714
      %732 = vst [vmem:[%s724 + $0x1c] sm:$0xf] %v715
      %733 = vst [vmem:[%s724 + $0x20] sm:$0xf] %v716
      %734 = vst [vmem:[%s724 + $0x24] sm:$0xf] %v717
      %735 = vst [vmem:[%s724 + $0x28] sm:$0xf] %v718
      %736 = vst [vmem:[%s724 + $0x2c] sm:$0xf] %v719
      %737 = vst [vmem:[%s724 + $0x30] sm:$0xf] %v720
      %738 = vst [vmem:[%s724 + $0x34] sm:$0xf] %v721
      %739 = vst [vmem:[%s724 + $0x38] sm:$0xf] %v722
      %740 = vst [vmem:[%s724 + $0x3c] sm:$0xf] %v723
      %s741 = scalar_lea.vmem %s3, 128
      %v742 = vld [vmem:[%s741] sm:$0xf]
      %v743 = vld [vmem:[%s741 + $0x4] sm:$0xf]
      %v744 = vld [vmem:[%s741 + $0x8] sm:$0xf]
      %v745 = vld [vmem:[%s741 + $0xc] sm:$0xf]
      %v746 = vld [vmem:[%s741 + $0x10] sm:$0xf]
      %v747 = vld [vmem:[%s741 + $0x14] sm:$0xf]
      %v748 = vld [vmem:[%s741 + $0x18] sm:$0xf]
      %v749 = vld [vmem:[%s741 + $0x1c] sm:$0xf]
      %v750 = vld [vmem:[%s741 + $0x20] sm:$0xf]
      %v751 = vld [vmem:[%s741 + $0x24] sm:$0xf]
      %v752 = vld [vmem:[%s741 + $0x28] sm:$0xf]
      %v753 = vld [vmem:[%s741 + $0x2c] sm:$0xf]
      %v754 = vld [vmem:[%s741 + $0x30] sm:$0xf]
      %v755 = vld [vmem:[%s741 + $0x34] sm:$0xf]
      %v756 = vld [vmem:[%s741 + $0x38] sm:$0xf]
      %v757 = vld [vmem:[%s741 + $0x3c] sm:$0xf]
      %v774 = vunpack.c.l.b16 %v742
      %v775 = vunpack.c.l.b16 %v743
      %v776 = vunpack.c.l.b16 %v744
      %v777 = vunpack.c.l.b16 %v745
      %v778 = vunpack.c.l.b16 %v746
      %v779 = vunpack.c.l.b16 %v747
      %v780 = vunpack.c.l.b16 %v748
      %v781 = vunpack.c.l.b16 %v749
      %v782 = vunpack.c.l.b16 %v750
      %v783 = vunpack.c.l.b16 %v751
      %v784 = vunpack.c.l.b16 %v752
      %v785 = vunpack.c.l.b16 %v753
      %v786 = vunpack.c.l.b16 %v754
      %v787 = vunpack.c.l.b16 %v755
      %v788 = vunpack.c.l.b16 %v756
      %v789 = vunpack.c.l.b16 %v757
      %v790 = vpack.c.b16 %v775, %v774
      %v791 = vpack.c.b16 %v777, %v776
      %v792 = vpack.c.b16 %v779, %v778
      %v793 = vpack.c.b16 %v781, %v780
      %v794 = vpack.c.b16 %v783, %v782
      %v795 = vpack.c.b16 %v785, %v784
      %v796 = vpack.c.b16 %v787, %v786
      %v797 = vpack.c.b16 %v789, %v788
      %806 = vmatpush.bf16.msra.mxu0 %v448
      %807 = vmatpush.bf16.msra.mxu0 %v447
      %808 = vmatpush.bf16.msra.mxu0 %v446
      %809 = vmatpush.bf16.msra.mxu0 %v445
      %810 = vmatpush.bf16.msra.mxu0 %v444
      %811 = vmatpush.bf16.msra.mxu0 %v443
      %812 = vmatpush.bf16.msra.mxu0 %v442
      %813 = vmatpush.bf16.msra.mxu0 %v441
      %814 = vmatmul.bf16.gmra.mxu0 %v790
      %v815 = vpop.f32.mrf.mxu0
      %v816 = vadd.f32 0.0, %v815
      %v817 = vpop.f32.mrf.mxu0
      %v818 = vadd.f32 0.0, %v817
      %819 = vmatmul.bf16.gmra.mxu0 %v791
      %v820 = vpop.f32.mrf.mxu0
      %v821 = vadd.f32 0.0, %v820
      %v822 = vpop.f32.mrf.mxu0
      %v823 = vadd.f32 0.0, %v822
      %824 = vmatmul.bf16.gmra.mxu0 %v792
      %v825 = vpop.f32.mrf.mxu0
      %v826 = vadd.f32 0.0, %v825
      %v827 = vpop.f32.mrf.mxu0
      %v828 = vadd.f32 0.0, %v827
      %829 = vmatmul.bf16.gmra.mxu0 %v793
      %v830 = vpop.f32.mrf.mxu0
      %v831 = vadd.f32 0.0, %v830
      %v832 = vpop.f32.mrf.mxu0
      %v833 = vadd.f32 0.0, %v832
      %834 = vmatmul.bf16.gmra.mxu0 %v794
      %v835 = vpop.f32.mrf.mxu0
      %v836 = vadd.f32 0.0, %v835
      %v837 = vpop.f32.mrf.mxu0
      %v838 = vadd.f32 0.0, %v837
      %839 = vmatmul.bf16.gmra.mxu0 %v795
      %v840 = vpop.f32.mrf.mxu0
      %v841 = vadd.f32 0.0, %v840
      %v842 = vpop.f32.mrf.mxu0
      %v843 = vadd.f32 0.0, %v842
      %844 = vmatmul.bf16.gmra.mxu0 %v796
      %v845 = vpop.f32.mrf.mxu0
      %v846 = vadd.f32 0.0, %v845
      %v847 = vpop.f32.mrf.mxu0
      %v848 = vadd.f32 0.0, %v847
      %849 = vmatmul.bf16.gmra.mxu0 %v797
      %v850 = vpop.f32.mrf.mxu0
      %v851 = vadd.f32 0.0, %v850
      %v852 = vpop.f32.mrf.mxu0
      %v853 = vadd.f32 0.0, %v852
      %854 = vdwg.mxu0
      %v855 = vpack.c.bf16 %v816, %v816
      %v856 = vpack.c.bf16 %v818, %v818
      %v857 = vpack.c.bf16 %v821, %v821
      %v858 = vpack.c.bf16 %v823, %v823
      %v859 = vpack.c.bf16 %v826, %v826
      %v860 = vpack.c.bf16 %v828, %v828
      %v861 = vpack.c.bf16 %v831, %v831
      %v862 = vpack.c.bf16 %v833, %v833
      %v863 = vpack.c.bf16 %v836, %v836
      %v864 = vpack.c.bf16 %v838, %v838
      %v865 = vpack.c.bf16 %v841, %v841
      %v866 = vpack.c.bf16 %v843, %v843
      %v867 = vpack.c.bf16 %v846, %v846
      %v868 = vpack.c.bf16 %v848, %v848
      %v869 = vpack.c.bf16 %v851, %v851
      %v870 = vpack.c.bf16 %v853, %v853
      %s871 = scalar_lea.vmem %s233, 128
      %872 = vst [vmem:[%s871] sm:$0xf] %v855
      %873 = vst [vmem:[%s871 + $0x4] sm:$0xf] %v856
      %874 = vst [vmem:[%s871 + $0x8] sm:$0xf] %v857
      %875 = vst [vmem:[%s871 + $0xc] sm:$0xf] %v858
      %876 = vst [vmem:[%s871 + $0x10] sm:$0xf] %v859
      %877 = vst [vmem:[%s871 + $0x14] sm:$0xf] %v860
      %878 = vst [vmem:[%s871 + $0x18] sm:$0xf] %v861
      %879 = vst [vmem:[%s871 + $0x1c] sm:$0xf] %v862
      %880 = vst [vmem:[%s871 + $0x20] sm:$0xf] %v863
      %881 = vst [vmem:[%s871 + $0x24] sm:$0xf] %v864
      %882 = vst [vmem:[%s871 + $0x28] sm:$0xf] %v865
      %883 = vst [vmem:[%s871 + $0x2c] sm:$0xf] %v866
      %884 = vst [vmem:[%s871 + $0x30] sm:$0xf] %v867
      %885 = vst [vmem:[%s871 + $0x34] sm:$0xf] %v868
      %886 = vst [vmem:[%s871 + $0x38] sm:$0xf] %v869
      %887 = vst [vmem:[%s871 + $0x3c] sm:$0xf] %v870
      %p888 = scmp.lt.s32.totalorder %s19, 1
      %s889 = scalar_select %p888, %s19, 1
      %p890 = scmp.lt.s32.totalorder %s20, 0
      %s891 = scalar_select %p890, %s20, 0
      %s892 = smul.addr %s889, 48
      %s893 = sadd.s32 %s891, %s892
      %s894 = smul.addr %s893, 4
      %s895 = scalar_lea.vmem %s4, %s894
      // Predicated region
      $region37: #{span_scorer_forward.2} parent=35 // pred_check
        %p896 = pneg %p138
      $region38: #{span_scorer_forward.2} parent=35 // pred_check_branch
        %898 = sbr.rel (%p896) target = $region40
      $region39: #{span_scorer_forward.2} parent=35 // pred_region
        _
      $region40: #{span_scorer_forward.2} parent=35 // pred_fallthru
        _
    $region36: #{span_scorer_forward.2} parent=5 // pred_fallthru
      _
    %p899 = scmp.le.s32.totalorder 2, %s10
    // Predicated region
    $region41: #{span_scorer_forward.2} parent=5 // pred_check
      %p900 = pneg %p899
    $region42: #{span_scorer_forward.2} parent=5 // pred_check_branch
      %902 = sbr.rel (%p900) target = $region44
    $region43: #{span_scorer_forward.2} parent=5 // pred_region
      %s903 = ssub.s32 %s10, 2
      // Predicated region
      $region45: #{span_scorer_forward.2} parent=43 // pred_check
        %p904 = pneg %p144
      $region46: #{span_scorer_forward.2} parent=43 // pred_check_branch
        %906 = sbr.rel (%p904) target = $region48
      $region47: #{span_scorer_forward.2} parent=43 // pred_region
        %p907 = scmp.lt.s32.totalorder %s21, 1
        %s908 = scalar_select %p907, %s21, 1
        %p909 = scmp.lt.s32.totalorder %s22, 0
        %s910 = scalar_select %p909, %s22, 0
        %s911 = smul.addr %s908, 48
        %s912 = sadd.s32 %s910, %s911
        %s913 = smul.addr %s912, 4
        %s914 = scalar_lea.vmem %s4, %s913
      $region48: #{span_scorer_forward.2} parent=43 // pred_fallthru
        _
    $region44: #{span_scorer_forward.2} parent=5 // pred_fallthru
      _
  $region6: #{span_scorer_forward.2} parent=0 // loop_footer
    %s14 = sadd.s32 1, %s10
  $region7: #{span_scorer_forward.2} parent=0 // loop_footer_branch
    %9 = sbr.rel target = $region3
  $region8: #{span_scorer_forward.2} parent=0 // loop_exit
    _

</llo_original>
